<compile_context>
chip_gen: v7x
topology: tpu7x:2x2x1
jax: 0.10.0
libtpu: 0.0.40
codegen_flags: <defaults>
</compile_context>

<pallas_src>
import functools

import numpy as np
import jax
import jax.numpy as jnp
from jax import lax
from jax.experimental import pallas as pl
from jax.experimental.pallas import tpu as pltpu


LANE = 128


def _round_up(n, m):
    return -(-n // m) * m


# ----------------------------------------------------------------------------
# Host-side parameter packing: unroll 3x3 / 1x1 convs into dense matmul weights.
# ----------------------------------------------------------------------------
def unroll_conv3x3(W):
    """W: (Cout, Cin, 3, 3) conv weight -> (Cin*9, Cout*9) matmul weight (numpy).

    out[b, co*9 + p] = sum_q x[b, ci*9 + q] * M[ci*9 + q, co*9 + p]
    reproduces F.conv2d(x, W, padding=1) on a 3x3 spatial grid exactly.
    """
    Wn = np.asarray(W, np.float32)
    Cout, Cin = Wn.shape[:2]
    M = np.zeros((Cin * 9, Cout * 9), np.float32)
    for co in range(Cout):
        for ci in range(Cin):
            for py in range(3):
                for px in range(3):
                    for qy in range(3):
                        for qx in range(3):
                            ky, kx = qy - py + 1, qx - px + 1
                            if 0 <= ky < 3 and 0 <= kx < 3:
                                M[ci * 9 + qy * 3 + qx, co * 9 + py * 3 + px] = Wn[co, ci, ky, kx]
    return M


def unroll_conv1x1(Wr):
    """Wr: (Cout, Cin) -> (Cin*9, Cout*9) block-diagonal matmul weight (numpy)."""
    Wn = np.asarray(Wr, np.float32)
    Cout, Cin = Wn.shape
    M = np.zeros((Cin * 9, Cout * 9), np.float32)
    for co in range(Cout):
        for ci in range(Cin):
            for p in range(9):
                M[ci * 9 + p, co * 9 + p] = Wn[co, ci]
    return M


def init_params(key, c_in, c_out, w_dim=10):
    c_hid = c_in * 4
    ks = jax.random.split(key, 8)
    s = 0.1
    return dict(
        W1=s * jax.random.normal(ks[0], (c_hid, c_in, 3, 3), jnp.float32),
        b1=s * jax.random.normal(ks[1], (c_hid,), jnp.float32),
        W2=s * jax.random.normal(ks[2], (c_out, c_hid, 3, 3), jnp.float32),
        b2=s * jax.random.normal(ks[3], (c_out,), jnp.float32),
        Wr=s * jax.random.normal(ks[4], (c_out, c_in), jnp.float32),
        # SLN affine maps: gamma = w @ Wg + bg, beta = w @ Wb + bb (per hidden channel)
        Wg=s * jax.random.normal(ks[5], (w_dim, c_hid), jnp.float32),
        bg=1.0 + s * jax.random.normal(ks[6], (c_hid,), jnp.float32),
        Wb=s * jax.random.normal(ks[7], (w_dim, c_hid), jnp.float32),
        bb=jnp.zeros((c_hid,), jnp.float32),
    )


def pack_kernel_params(params, matmul_dtype=jnp.bfloat16):
    """Precompute unrolled, lane-padded weights consumed by the kernel.

    Call ONCE per set of params (host-side numpy loops); do NOT call inside jit
    or per forward pass.  matmul_dtype=bf16 is recommended on all TPU
    generations (v5e MXU has no native f32 path); LayerNorm/SLN math stays f32.
    """
    W1 = np.asarray(params["W1"]); b1 = np.asarray(params["b1"])
    W2 = np.asarray(params["W2"]); b2 = np.asarray(params["b2"])
    Wr = np.asarray(params["Wr"])
    Wg = np.asarray(params["Wg"]); bg = np.asarray(params["bg"])
    Wb = np.asarray(params["Wb"]); bb = np.asarray(params["bb"])

    c_hid, c_in = W1.shape[:2]
    c_out = W2.shape[0]
    w_dim = Wg.shape[0]
    c_in9, c_hid9, c_out9 = c_in * 9, c_hid * 9, c_out * 9
    chp = _round_up(c_hid9, LANE)   # hidden width padded to lanes (180 -> 256)
    cop = _round_up(c_out9, LANE)   # output width padded to lanes (27 -> 128)

    # conv1 (3x3): (Cin*9, chp); zero-padded columns -> padded h lanes are exactly 0.
    wu1 = np.zeros((c_in9, chp), np.float32)
    wu1[:, :c_hid9] = unroll_conv3x3(W1)
    b1p = np.zeros((1, chp), np.float32)
    b1p[0, :c_hid9] = np.repeat(b1, 9)

    # conv2 (3x3): (chp, cop); padded rows / columns are zero.
    wu2 = np.zeros((chp, cop), np.float32)
    wu2[:c_hid9, :c_out9] = unroll_conv3x3(W2)
    # residual 1x1: (Cin*9, cop)
    wres = np.zeros((c_in9, cop), np.float32)
    wres[:, :c_out9] = unroll_conv1x1(Wr)
    b2p = np.zeros((1, cop), np.float32)
    b2p[0, :c_out9] = np.repeat(b2, 9)

    # SLN affine maps, broadcast per-channel -> per (channel, pixel), zero-padded
    # columns -> gamma/beta are exactly 0 on padded lanes.
    wg = np.zeros((w_dim, chp), np.float32); wg[:, :c_hid9] = np.repeat(Wg, 9, axis=1)
    bgp = np.zeros((1, chp), np.float32);    bgp[0, :c_hid9] = np.repeat(bg, 9)
    wb = np.zeros((w_dim, chp), np.float32); wb[:, :c_hid9] = np.repeat(Wb, 9, axis=1)
    bbp = np.zeros((1, chp), np.float32);    bbp[0, :c_hid9] = np.repeat(bb, 9)

    return dict(
        wu1=jnp.asarray(wu1, matmul_dtype),    # (Cin*9, chp)  MXU operand
        wu2=jnp.asarray(wu2, matmul_dtype),    # (chp, cop)    MXU operand
        wres=jnp.asarray(wres, matmul_dtype),  # (Cin*9, cop)  MXU operand
        b1=jnp.asarray(b1p),                   # f32 (1, chp)
        b2=jnp.asarray(b2p),                   # f32 (1, cop)
        Wg=jnp.asarray(wg), bg=jnp.asarray(bgp),   # f32, used INSIDE the kernel
        Wb=jnp.asarray(wb), bb=jnp.asarray(bbp),
        c_in9=c_in9, c_hid9=c_hid9, c_out9=c_out9, chp=chp, cop=cop, w_dim=w_dim,
        matmul_dtype=matmul_dtype,
    )


# ----------------------------------------------------------------------------
# Pallas kernel: fused conv3x3 -> SLN -> relu -> conv3x3 + residual, per batch tile.
# ----------------------------------------------------------------------------
def cnn3x3_kernel(x_ref, w_ref, wu1_ref, b1_ref, wg_ref, bg_ref, wb_ref, bb_ref,
                  wu2_ref, wres_ref, b2_ref, o_ref, *, inv_nfeat, n_pad, matmul_dtype):
    x = x_ref[...]                                    # (tb, Cin*9) f32
    xm = x.astype(matmul_dtype)                       # MXU operand cast (free, VPU)

    # conv1 (3x3, pad=1) as a dense matmul on the MXU; f32 accumulation.
    h = jnp.dot(xm, wu1_ref[...], preferred_element_type=jnp.float32) + b1_ref[...]

    # LayerNorm over the sample's TRUE c_hid*9 features.  Padded lanes of h are
    # exactly 0 (zero wu1 columns / zero b1), so:
    #   mu_true       = sum_all(h) / n_true
    #   sum_true d^2  = sum_all((h-mu)^2) - n_pad * mu^2   (exact correction)
    # i.e. two-pass-quality variance without masking the padded lanes.
    mu = jnp.sum(h, axis=-1, keepdims=True) * inv_nfeat
    d = h - mu
    var = (jnp.sum(d * d, axis=-1, keepdims=True) - n_pad * (mu * mu)) * inv_nfeat
    hn = d * lax.rsqrt(jnp.maximum(var, 0.0) + 1e-5)

    # SLN modulation computed in-kernel: two tiny K=w_dim f32 dots (hide under DMA).
    wv = w_ref[...]                                   # (tb, w_dim) f32
    gamma = jnp.dot(wv, wg_ref[...], preferred_element_type=jnp.float32) + bg_ref[...]
    beta = jnp.dot(wv, wb_ref[...], preferred_element_type=jnp.float32) + bb_ref[...]

    # Padded lanes: gamma = beta = 0 -> h = 0 there; relu keeps 0; wu2 padded rows
    # are 0 anyway, so the padded lanes never leak into the output.
    h = jnp.maximum(gamma * hn + beta, 0.0)

    # conv2 + residual as two accumulated, lane-aligned MXU dots (no lane concat).
    out = (jnp.dot(h.astype(matmul_dtype), wu2_ref[...], preferred_element_type=jnp.float32)
           + jnp.dot(xm, wres_ref[...], preferred_element_type=jnp.float32)
           + b2_ref[...])
    o_ref[...] = out.astype(o_ref.dtype)


def cnngen_forward(kp, inputs, w, i=None, *, tile_b=None):
    """CNNGen.forward: inputs (B, C_in, 3, 3) NCHW, w (B, w_dim) -> (B, C_out, 3, 3).

    `kp` is the cached output of pack_kernel_params.  If `i` is given, returns the
    i-th output channel: (B, 3, 3).
    """
    B, c_in, H, W_ = inputs.shape
    assert (H, W_) == (3, 3)
    c_in9, c_hid9, c_out9 = kp["c_in9"], kp["c_hid9"], kp["c_out9"]
    chp, cop, w_dim = kp["chp"], kp["cop"], kp["w_dim"]
    mdt = kp["matmul_dtype"]
    assert c_in * 9 == c_in9
    assert w.shape == (B, w_dim)

    if tile_b is None:
        # Default: 2 "parallel" grid steps so both v7x TensorCores get work.
        # On single-TC v5e/v6e pass tile_b=_round_up(B, 8) to collapse to 1 step.
        tile_b = max(8, min(512, _round_up(pl.cdiv(B, 2), 8)))
    assert tile_b % 8 == 0

    # (c, h, w) row-major flatten; stays f32, cast to MXU dtype inside the kernel.
    x = inputs.reshape(B, c_in9).astype(jnp.float32)
    wv = w.astype(jnp.float32)

    # Pad the batch to a multiple of tile_b (padded rows are discarded afterwards).
    Bp = _round_up(B, tile_b)
    if Bp != B:
        pad = Bp - B
        x = jnp.pad(x, ((0, pad), (0, 0)))
        wv = jnp.pad(wv, ((0, pad), (0, 0)))

    kernel = functools.partial(
        cnn3x3_kernel,
        inv_nfeat=1.0 / float(c_hid9),
        n_pad=float(chp - c_hid9),
        matmul_dtype=mdt,
    )
    const = lambda shape: pl.BlockSpec(shape, lambda b: (0, 0))       # grid-invariant weights

    # Advisory cost so XLA overlaps this tiny custom call with surrounding ops.
    itemsize_w = jnp.dtype(mdt).itemsize
    flops = 2 * Bp * (c_in9 * chp + chp * cop + c_in9 * cop + 2 * w_dim * chp)
    bytes_accessed = (
        Bp * (c_in9 + w_dim + cop) * 4
        + int(kp["wu1"].size + kp["wu2"].size + kp["wres"].size) * itemsize_w
        + int(kp["b1"].size + kp["b2"].size + kp["Wg"].size + kp["bg"].size
              + kp["Wb"].size + kp["bb"].size) * 4
    )
    cost = pl.CostEstimate(flops=int(flops), transcendentals=int(Bp),
                           bytes_accessed=int(bytes_accessed))

    out_flat = pl.pallas_call(
        kernel,
        out_shape=jax.ShapeDtypeStruct((Bp, cop), jnp.float32),
        grid_spec=pltpu.PrefetchScalarGridSpec(
            num_scalar_prefetch=0,
            grid=(Bp // tile_b,),
            in_specs=[
                pl.BlockSpec((tile_b, c_in9), lambda b: (b, 0)),      # x
                pl.BlockSpec((tile_b, w_dim), lambda b: (b, 0)),      # w (SLN conditioning)
                const((c_in9, chp)),                                  # wu1
                const((1, chp)),                                      # b1
                const((w_dim, chp)),                                  # Wg
                const((1, chp)),                                      # bg
                const((w_dim, chp)),                                  # Wb
                const((1, chp)),                                      # bb
                const((chp, cop)),                                    # wu2
                const((c_in9, cop)),                                  # wres
                const((1, cop)),                                      # b2
            ],
            out_specs=pl.BlockSpec((tile_b, cop), lambda b: (b, 0)),  # lane-dense output
        ),
        compiler_params=pltpu.CompilerParams(dimension_semantics=("parallel",)),
        cost_estimate=cost,
    )(x, wv, kp["wu1"], kp["b1"], kp["Wg"], kp["bg"], kp["Wb"], kp["bb"],
      kp["wu2"], kp["wres"], kp["b2"])

    out = out_flat[:B, :c_out9].reshape(B, c_out9 // 9, 3, 3)
    if i is not None:
        return out[:, i, :, :]
    return out


# ----------------------------------------------------------------------------
# Pure-JAX reference (NCHW convs) for correctness checking.
# ----------------------------------------------------------------------------
def ref_forward(params, x, w, i=None):
    dn = ("NCHW", "OIHW", "NCHW")
    h = lax.conv_general_dilated(x, params["W1"], (1, 1), "SAME", dimension_numbers=dn)
    h = h + params["b1"][None, :, None, None]
    B = h.shape[0]
    hf = h.reshape(B, -1)
    mu = hf.mean(-1, keepdims=True)
    var = ((hf - mu) ** 2).mean(-1, keepdims=True)
    hn = ((hf - mu) / jnp.sqrt(var + 1e-5)).reshape(h.shape)
    gamma = w @ params["Wg"] + params["bg"]
    beta = w @ params["Wb"] + params["bb"]
    h = gamma[:, :, None, None] * hn + beta[:, :, None, None]
    h = jnp.maximum(h, 0.0)
    out = lax.conv_general_dilated(h, params["W2"], (1, 1), "SAME", dimension_numbers=dn)
    out = out + params["b2"][None, :, None, None]
    out = out + lax.conv_general_dilated(
        x, params["Wr"][:, :, None, None], (1, 1), "SAME", dimension_numbers=dn)
    if i is not None:
        return out[:, i, :, :]
    return out


if __name__ == "__main__":
    # Module-consistent shapes: feature_num=3, context_feature_num=2 -> total_feature=5,
    # hidden=20, output_channel=3, w_dim=10.  Batch 64 -> default tile_b=32, grid=(2,)
    # ("parallel": both v7x TensorCores get a step; harmless on v5e/v6e).
    B, feature_num, context_feature_num, output_channel, w_dim = 64, 3, 2, 3, 10
    c_in = feature_num + context_feature_num

    key = jax.random.PRNGKey(0)
    k_p, k_x, k_w = jax.random.split(key, 3)
    params = init_params(k_p, c_in, output_channel, w_dim)
    inputs = jax.random.normal(k_x, (B, c_in, 3, 3), jnp.float32)   # NCHW, like torch
    w = jax.random.normal(k_w, (B, w_dim), jnp.float32)             # SLN conditioning

    # Pack once outside the forward path (host-side unrolling is cached here).
    kp_f32 = pack_kernel_params(params, matmul_dtype=jnp.float32)    # strict-accuracy path
    kp_bf16 = pack_kernel_params(params, matmul_dtype=jnp.bfloat16)  # recommended MXU path (all gens)

    out = jax.block_until_ready(cnngen_forward(kp_f32, inputs, w))          # (B, C_out, 3, 3)
    out_i = jax.block_until_ready(cnngen_forward(kp_f32, inputs, w, i=1))   # (B, 3, 3)
    out_bf16 = jax.block_until_ready(cnngen_forward(kp_bf16, inputs, w))    # bf16 MXU operands

    ref = ref_forward(params, inputs, w)
    ref_i = ref_forward(params, inputs, w, i=1)
    np.testing.assert_allclose(np.asarray(out), np.asarray(ref), rtol=1e-4, atol=2e-4)
    np.testing.assert_allclose(np.asarray(out_i), np.asarray(ref_i), rtol=1e-4, atol=2e-4)
    np.testing.assert_allclose(np.asarray(out_bf16), np.asarray(ref), rtol=1e-1, atol=1e-1)
    assert out.shape == (B, output_channel, 3, 3) and out_i.shape == (B, 3, 3)

    print("KERNEL_OK")
</pallas_src>

<mosaic_0001>
module attributes {stable_mosaic.version = 11 : i64} {
  func.func @cnn3x3_kernel(%arg0: i32, %arg1: memref<32x45xf32, #tpu.memory_space<vmem>>, %arg2: memref<32x10xf32, #tpu.memory_space<vmem>>, %arg3: memref<45x256xf32, #tpu.memory_space<vmem>>, %arg4: memref<1x256xf32, #tpu.memory_space<vmem>>, %arg5: memref<10x256xf32, #tpu.memory_space<vmem>>, %arg6: memref<1x256xf32, #tpu.memory_space<vmem>>, %arg7: memref<10x256xf32, #tpu.memory_space<vmem>>, %arg8: memref<1x256xf32, #tpu.memory_space<vmem>>, %arg9: memref<256x128xf32, #tpu.memory_space<vmem>>, %arg10: memref<45x128xf32, #tpu.memory_space<vmem>>, %arg11: memref<1x128xf32, #tpu.memory_space<vmem>>, %arg12: memref<32x128xf32, #tpu.memory_space<vmem>>) attributes {dimension_semantics = [#tpu.dimension_semantics<parallel>], iteration_bounds = array<i64: 2>, scalar_prefetch = 0 : i64, scratch_operands = 0 : i64, tpu.core_type = #tpu.core_type<tc>, window_params = [{transform_indices = @transform_0, window_bounds = array<i64: 32, 45>}, {transform_indices = @transform_1, window_bounds = array<i64: 32, 10>}, {pipeline_mode = #tpu.pipeline_mode<synchronous>, transform_indices = @transform_2, window_bounds = array<i64: 45, 256>}, {pipeline_mode = #tpu.pipeline_mode<synchronous>, transform_indices = @transform_3, window_bounds = array<i64: 1, 256>}, {pipeline_mode = #tpu.pipeline_mode<synchronous>, transform_indices = @transform_4, window_bounds = array<i64: 10, 256>}, {pipeline_mode = #tpu.pipeline_mode<synchronous>, transform_indices = @transform_5, window_bounds = array<i64: 1, 256>}, {pipeline_mode = #tpu.pipeline_mode<synchronous>, transform_indices = @transform_6, window_bounds = array<i64: 10, 256>}, {pipeline_mode = #tpu.pipeline_mode<synchronous>, transform_indices = @transform_7, window_bounds = array<i64: 1, 256>}, {pipeline_mode = #tpu.pipeline_mode<synchronous>, transform_indices = @transform_8, window_bounds = array<i64: 256, 128>}, {pipeline_mode = #tpu.pipeline_mode<synchronous>, transform_indices = @transform_9, window_bounds = array<i64: 45, 128>}, {pipeline_mode = #tpu.pipeline_mode<synchronous>, transform_indices = @transform_10, window_bounds = array<i64: 1, 128>}, {transform_indices = @transform_11, window_bounds = array<i64: 32, 128>}]} {
    %c0 = arith.constant 0 : index
    %c0_0 = arith.constant 0 : index
    %0 = vector.load %arg1[%c0, %c0_0] : memref<32x45xf32, #tpu.memory_space<vmem>>, vector<32x45xf32>
    %c0_1 = arith.constant 0 : index
    %c0_2 = arith.constant 0 : index
    %1 = vector.load %arg3[%c0_1, %c0_2] : memref<45x256xf32, #tpu.memory_space<vmem>>, vector<45x256xf32>
    %cst = arith.constant dense<0.000000e+00> : vector<32x256xf32>
    %2 = tpu.matmul %0, %1, %cst {dimension_numbers = #tpu.dot_dimension_numbers<[1], [0], [0], [1], [0, 0, 1, 1], [], []>} : vector<32x45xf32>, vector<45x256xf32>, vector<32x256xf32> -> vector<32x256xf32>
    %c0_3 = arith.constant 0 : index
    %c0_4 = arith.constant 0 : index
    %3 = vector.load %arg4[%c0_3, %c0_4] : memref<1x256xf32, #tpu.memory_space<vmem>>, vector<1x256xf32>
    %4 = vector.broadcast %3 : vector<1x256xf32> to vector<32x256xf32>
    %5 = arith.addf %2, %4 : vector<32x256xf32>
    %cst_5 = arith.constant dense<0.000000e+00> : vector<32xf32>
    %6 = vector.multi_reduction <add>, %5, %cst_5 [1] : vector<32x256xf32> to vector<32xf32>
    %7 = vector.shape_cast %6 : vector<32xf32> to vector<32x1xf32>
    %cst_6 = arith.constant 0.00555555569 : f32
    %8 = vector.broadcast %cst_6 : f32 to vector<32x1xf32>
    %9 = arith.mulf %7, %8 : vector<32x1xf32>
    %10 = vector.broadcast %9 : vector<32x1xf32> to vector<32x256xf32>
    %11 = arith.subf %5, %10 : vector<32x256xf32>
    %12 = arith.mulf %11, %11 : vector<32x256xf32>
    %cst_7 = arith.constant dense<0.000000e+00> : vector<32xf32>
    %13 = vector.multi_reduction <add>, %12, %cst_7 [1] : vector<32x256xf32> to vector<32xf32>
    %14 = vector.shape_cast %13 : vector<32xf32> to vector<32x1xf32>
    %15 = arith.mulf %9, %9 : vector<32x1xf32>
    %cst_8 = arith.constant 7.600000e+01 : f32
    %16 = vector.broadcast %cst_8 : f32 to vector<32x1xf32>
    %17 = arith.mulf %16, %15 : vector<32x1xf32>
    %18 = arith.subf %14, %17 : vector<32x1xf32>
    %cst_9 = arith.constant 0.00555555569 : f32
    %19 = vector.broadcast %cst_9 : f32 to vector<32x1xf32>
    %20 = arith.mulf %18, %19 : vector<32x1xf32>
    %cst_10 = arith.constant 0.000000e+00 : f32
    %21 = vector.broadcast %cst_10 : f32 to vector<32x1xf32>
    %22 = arith.maximumf %20, %21 : vector<32x1xf32>
    %cst_11 = arith.constant 9.99999974E-6 : f32
    %23 = vector.broadcast %cst_11 : f32 to vector<32x1xf32>
    %24 = arith.addf %22, %23 : vector<32x1xf32>
    %25 = math.rsqrt %24 : vector<32x1xf32>
    %26 = vector.broadcast %25 : vector<32x1xf32> to vector<32x256xf32>
    %27 = arith.mulf %11, %26 : vector<32x256xf32>
    %c0_12 = arith.constant 0 : index
    %c0_13 = arith.constant 0 : index
    %28 = vector.load %arg2[%c0_12, %c0_13] : memref<32x10xf32, #tpu.memory_space<vmem>>, vector<32x10xf32>
    %c0_14 = arith.constant 0 : index
    %c0_15 = arith.constant 0 : index
    %29 = vector.load %arg5[%c0_14, %c0_15] : memref<10x256xf32, #tpu.memory_space<vmem>>, vector<10x256xf32>
    %cst_16 = arith.constant dense<0.000000e+00> : vector<32x256xf32>
    %30 = tpu.matmul %28, %29, %cst_16 {dimension_numbers = #tpu.dot_dimension_numbers<[1], [0], [0], [1], [0, 0, 1, 1], [], []>} : vector<32x10xf32>, vector<10x256xf32>, vector<32x256xf32> -> vector<32x256xf32>
    %c0_17 = arith.constant 0 : index
    %c0_18 = arith.constant 0 : index
    %31 = vector.load %arg6[%c0_17, %c0_18] : memref<1x256xf32, #tpu.memory_space<vmem>>, vector<1x256xf32>
    %32 = vector.broadcast %31 : vector<1x256xf32> to vector<32x256xf32>
    %33 = arith.addf %30, %32 : vector<32x256xf32>
    %c0_19 = arith.constant 0 : index
    %c0_20 = arith.constant 0 : index
    %34 = vector.load %arg7[%c0_19, %c0_20] : memref<10x256xf32, #tpu.memory_space<vmem>>, vector<10x256xf32>
    %cst_21 = arith.constant dense<0.000000e+00> : vector<32x256xf32>
    %35 = tpu.matmul %28, %34, %cst_21 {dimension_numbers = #tpu.dot_dimension_numbers<[1], [0], [0], [1], [0, 0, 1, 1], [], []>} : vector<32x10xf32>, vector<10x256xf32>, vector<32x256xf32> -> vector<32x256xf32>
    %c0_22 = arith.constant 0 : index
    %c0_23 = arith.constant 0 : index
    %36 = vector.load %arg8[%c0_22, %c0_23] : memref<1x256xf32, #tpu.memory_space<vmem>>, vector<1x256xf32>
    %37 = vector.broadcast %36 : vector<1x256xf32> to vector<32x256xf32>
    %38 = arith.addf %35, %37 : vector<32x256xf32>
    %39 = arith.mulf %33, %27 : vector<32x256xf32>
    %40 = arith.addf %39, %38 : vector<32x256xf32>
    %cst_24 = arith.constant 0.000000e+00 : f32
    %41 = vector.broadcast %cst_24 : f32 to vector<32x256xf32>
    %42 = arith.maximumf %40, %41 : vector<32x256xf32>
    %c0_25 = arith.constant 0 : index
    %c0_26 = arith.constant 0 : index
    %43 = vector.load %arg9[%c0_25, %c0_26] : memref<256x128xf32, #tpu.memory_space<vmem>>, vector<256x128xf32>
    %cst_27 = arith.constant dense<0.000000e+00> : vector<32x128xf32>
    %44 = tpu.matmul %42, %43, %cst_27 {dimension_numbers = #tpu.dot_dimension_numbers<[1], [0], [0], [1], [0, 0, 1, 1], [], []>} : vector<32x256xf32>, vector<256x128xf32>, vector<32x128xf32> -> vector<32x128xf32>
    %c0_28 = arith.constant 0 : index
    %c0_29 = arith.constant 0 : index
    %45 = vector.load %arg10[%c0_28, %c0_29] : memref<45x128xf32, #tpu.memory_space<vmem>>, vector<45x128xf32>
    %cst_30 = arith.constant dense<0.000000e+00> : vector<32x128xf32>
    %46 = tpu.matmul %0, %45, %cst_30 {dimension_numbers = #tpu.dot_dimension_numbers<[1], [0], [0], [1], [0, 0, 1, 1], [], []>} : vector<32x45xf32>, vector<45x128xf32>, vector<32x128xf32> -> vector<32x128xf32>
    %47 = arith.addf %44, %46 : vector<32x128xf32>
    %c0_31 = arith.constant 0 : index
    %c0_32 = arith.constant 0 : index
    %48 = vector.load %arg11[%c0_31, %c0_32] : memref<1x128xf32, #tpu.memory_space<vmem>>, vector<1x128xf32>
    %49 = vector.broadcast %48 : vector<1x128xf32> to vector<32x128xf32>
    %50 = arith.addf %47, %49 : vector<32x128xf32>
    %c0_33 = arith.constant 0 : index
    %c0_34 = arith.constant 0 : index
    %51 = vector.load %arg12[%c0_33, %c0_34] : memref<32x128xf32, #tpu.memory_space<vmem>>, vector<32x128xf32>
    tpu.vector_store %arg12[%c0_33, %c0_34], %50 {strides = array<i32>} : memref<32x128xf32, #tpu.memory_space<vmem>>, vector<32x128xf32>,
    return
  }
  func.func @transform_0(%arg0: i32) -> (i32, i32) {
    %c0_i32 = arith.constant 0 : i32
    %c0_i32_0 = arith.constant 0 : i32
    return %arg0, %c0_i32 : i32, i32
  }
  func.func @transform_1(%arg0: i32) -> (i32, i32) {
    %c0_i32 = arith.constant 0 : i32
    %c0_i32_0 = arith.constant 0 : i32
    return %arg0, %c0_i32 : i32, i32
  }
  func.func @transform_2(%arg0: i32) -> (i32, i32) {
    %c0_i32 = arith.constant 0 : i32
    %c0_i32_0 = arith.constant 0 : i32
    %c0_i32_1 = arith.constant 0 : i32
    return %c0_i32, %c0_i32_0 : i32, i32
  }
  func.func @transform_3(%arg0: i32) -> (i32, i32) {
    %c0_i32 = arith.constant 0 : i32
    %c0_i32_0 = arith.constant 0 : i32
    %c0_i32_1 = arith.constant 0 : i32
    return %c0_i32, %c0_i32_0 : i32, i32
  }
  func.func @transform_4(%arg0: i32) -> (i32, i32) {
    %c0_i32 = arith.constant 0 : i32
    %c0_i32_0 = arith.constant 0 : i32
    %c0_i32_1 = arith.constant 0 : i32
    return %c0_i32, %c0_i32_0 : i32, i32
  }
  func.func @transform_5(%arg0: i32) -> (i32, i32) {
    %c0_i32 = arith.constant 0 : i32
    %c0_i32_0 = arith.constant 0 : i32
    %c0_i32_1 = arith.constant 0 : i32
    return %c0_i32, %c0_i32_0 : i32, i32
  }
  func.func @transform_6(%arg0: i32) -> (i32, i32) {
    %c0_i32 = arith.constant 0 : i32
    %c0_i32_0 = arith.constant 0 : i32
    %c0_i32_1 = arith.constant 0 : i32
    return %c0_i32, %c0_i32_0 : i32, i32
  }
  func.func @transform_7(%arg0: i32) -> (i32, i32) {
    %c0_i32 = arith.constant 0 : i32
    %c0_i32_0 = arith.constant 0 : i32
    %c0_i32_1 = arith.constant 0 : i32
    return %c0_i32, %c0_i32_0 : i32, i32
  }
  func.func @transform_8(%arg0: i32) -> (i32, i32) {
    %c0_i32 = arith.constant 0 : i32
    %c0_i32_0 = arith.constant 0 : i32
    %c0_i32_1 = arith.constant 0 : i32
    return %c0_i32, %c0_i32_0 : i32, i32
  }
  func.func @transform_9(%arg0: i32) -> (i32, i32) {
    %c0_i32 = arith.constant 0 : i32
    %c0_i32_0 = arith.constant 0 : i32
    %c0_i32_1 = arith.constant 0 : i32
    return %c0_i32, %c0_i32_0 : i32, i32
  }
  func.func @transform_10(%arg0: i32) -> (i32, i32) {
    %c0_i32 = arith.constant 0 : i32
    %c0_i32_0 = arith.constant 0 : i32
    %c0_i32_1 = arith.constant 0 : i32
    return %c0_i32, %c0_i32_0 : i32, i32
  }
  func.func @transform_11(%arg0: i32) -> (i32, i32) {
    %c0_i32 = arith.constant 0 : i32
    %c0_i32_0 = arith.constant 0 : i32
    return %arg0, %c0_i32 : i32, i32
  }
}

</mosaic_0001>

<llo_original>
// kernel: tpu_custom_call.1
$region0: #{tpu_custom_call.1}
  #allocation0 [shape = 'u32[]', space=smem, size = 0x4, offset = 0x4, fixed_abs, tag = 'smem constant byte address 0x4 - core index']
  #allocation1 [shape = 'u32[144,128]{1,0:T(1,128)}', space=vmem, size = 0x12000, scoped, tag = 'internal scratch']
  %s0 = inlined_call_operand.vmem [shape: f32[64,45], index: 0, kind: input, shape index: {}]
  %s1 = inlined_call_operand.vmem [shape: f32[64,10], index: 1, kind: input, shape index: {}]
  %s2 = inlined_call_operand.vmem [shape: f32[45,256], index: 2, kind: input, shape index: {}]
  %s3 = inlined_call_operand.vmem [shape: f32[1,256], index: 3, kind: input, shape index: {}]
  %s4 = inlined_call_operand.vmem [shape: f32[10,256], index: 4, kind: input, shape index: {}]
  %s5 = inlined_call_operand.hbm [shape: f32[1,256], index: 5, kind: input, shape index: {}]
  %s6 = inlined_call_operand.vmem [shape: f32[10,256], index: 6, kind: input, shape index: {}]
  %s7 = inlined_call_operand.vmem [shape: f32[1,256], index: 7, kind: input, shape index: {}]
  %s8 = inlined_call_operand.hbm [shape: f32[256,128], index: 8, kind: input, shape index: {}]
  %s9 = inlined_call_operand.vmem [shape: f32[45,128], index: 9, kind: input, shape index: {}]
  %s10 = inlined_call_operand.vmem [shape: f32[1,128], index: 10, kind: input, shape index: {}]
  %s11 = inlined_call_operand.hbm [shape: f32[64,128], index: 11, kind: output, shape index: {}]
  %s12 = sld [smem:[#allocation0]]
  $region85: #{tpu_custom_call.1} parent=0
    _
  %s14 = ssub.s32 1, %s12
  %s15 = scalar_select 0, %s14, %s12
  $region1: #{tpu_custom_call.1} parent=0
    #allocation2 [shape = 'u8[1024]{0}', space=vmem, size = 0x400, scoped, tag = 'input window, operand 5, single buffered']
    #allocation3 [shape = 's32[2]{0}', space=sflag, size = 0x8, scoped, tag = 'scoped memory for tpu_custom_call.1']
    #allocation4 [shape = 's32[2]{0}', space=sflag, size = 0x8, scoped, tag = 'scoped memory for tpu_custom_call.1']
    #allocation5 [shape = 'u8[131072]{0}', space=vmem, size = 0x20000, scoped, tag = 'input window, operand 8, single buffered']
    #allocation6 [shape = 's32[1]{0}', space=sflag, size = 0x4, scoped, tag = 'scoped memory for tpu_custom_call.1']
    #allocation7 [shape = 'u8[32768]{0}', space=vmem, size = 0x8000, scoped, tag = 'output window, operand 0']
    %16 = vsyncpa [#allocation3], 0
    %17 = vsyncpa [#allocation6], 0
    %18 = vsyncpa [#allocation4], 0
    %s19 = scalar_lea.sflag [#allocation4], 1
    %20 = vsyncpa %s19, 0
    loop: start=0, step=1, limit=4
    $region2: #{tpu_custom_call.1} parent=1 // loop_pre_header
      _
    $region3: #{tpu_custom_call.1} parent=1 // loop_header
      %s22 = sphi 0, %s26
      %p23 = scmp.ge.s32.totalorder %s22, 4
      %s32 = sphi 0, %s34
      %s35 = sphi 0, %s32
      %s36 = sphi 0, %s35
      %s52 = sphi 0, %s36
      %s58 = sphi 0, %s60
      %s61 = sphi 0, %s58
      %s62 = sphi 0, %s61
      %s78 = sphi 0, %s62
      %s82 = sphi 0, %s82
      %s84 = sphi 0, %s82
      %s85 = sphi 0, %s84
      %s99 = sphi 0, %s85
      %s103 = sphi 0, %s103
      %s105 = sphi 0, %s103
      %s106 = sphi 0, %s105
      %s120 = sphi 0, %s106
      %s124 = sphi 0, %s124
      %s126 = sphi 0, %s124
      %s127 = sphi 0, %s126
      %s141 = sphi 0, %s127
      %s145 = sphi 0, %s145
      %s147 = sphi 0, %s145
      %s148 = sphi 0, %s147
      %s162 = sphi 0, %s148
      %s166 = sphi 0, %s166
      %s168 = sphi 0, %s166
      %s169 = sphi 0, %s168
      %s183 = sphi 0, %s169
      %s187 = sphi 0, %s187
      %s189 = sphi 0, %s187
      %s190 = sphi 0, %s189
      %s204 = sphi 0, %s190
      %s208 = sphi 0, %s208
      %s210 = sphi 0, %s208
      %s211 = sphi 0, %s210
      %s225 = sphi 0, %s211
      %s229 = sphi 0, %s229
      %s231 = sphi 0, %s229
      %s232 = sphi 0, %s231
      %s246 = sphi 0, %s232
      %s250 = sphi 0, %s250
      %s252 = sphi 0, %s250
      %s253 = sphi 0, %s252
      %s267 = sphi 0, %s253
      %s273 = sphi 0, %s275
      %s276 = sphi 0, %s273
      %s277 = sphi 0, %s276
      %s293 = sphi 0, %s277
    $region4: #{tpu_custom_call.1} parent=1 // loop_header_branch
      %25 = sbr.rel (%p23) target = $region8
    $region5: #{tpu_custom_call.1} parent=1 // loop_body
      %s27 = ssub.s32 %s22, 1
      %s28 = ssub.s32 %s22, 2
      %s29 = sadd.s32 %s22, 1
      %s30 = ssub.s32 %s22, %s29
      %p31 = scmp.eq.s32.totalorder %s30, 0
      %s33 = sadd.s32 %s32, 1
      %s34 = scalar_select %p31, %s32, %s33
      %p37 = pneg %p31
      %p38 = scmp.eq.s32.totalorder %s22, 1
      %p39 = por %p37, %p38
      %p40 = scmp.ne.s32.totalorder %s32, %s35
      %p41 = scmp.eq.s32.totalorder %s22, 0
      %p42 = por %p40, %p41
      %p43 = scmp.ne.s32.totalorder %s32, %s35
      %p44 = scmp.eq.s32.totalorder %s27, 1
      %p45 = por %p43, %p44
      %p46 = scmp.ne.s32.totalorder %s35, %s36
      %p47 = scmp.eq.s32.totalorder %s27, 0
      %p48 = por %p46, %p47
      %p49 = scmp.ne.s32.totalorder %s35, %s36
      %p50 = scmp.eq.s32.totalorder %s28, 1
      %p51 = por %p49, %p50
      %p53 = scmp.ne.s32.totalorder %s36, %s52
      %p54 = scmp.eq.s32.totalorder %s28, 0
      %p55 = por %p53, %p54
      %s56 = ssub.s32 %s22, %s29
      %p57 = scmp.eq.s32.totalorder %s56, 0
      %s59 = sadd.s32 %s58, 1
      %s60 = scalar_select %p57, %s58, %s59
      %p63 = pneg %p57
      %p64 = scmp.eq.s32.totalorder %s22, 1
      %p65 = por %p63, %p64
      %p66 = scmp.ne.s32.totalorder %s58, %s61
      %p67 = scmp.eq.s32.totalorder %s22, 0
      %p68 = por %p66, %p67
      %p69 = scmp.ne.s32.totalorder %s58, %s61
      %p70 = scmp.eq.s32.totalorder %s27, 1
      %p71 = por %p69, %p70
      %p72 = scmp.ne.s32.totalorder %s61, %s62
      %p73 = scmp.eq.s32.totalorder %s27, 0
      %p74 = por %p72, %p73
      %p75 = scmp.ne.s32.totalorder %s61, %s62
      %p76 = scmp.eq.s32.totalorder %s28, 1
      %p77 = por %p75, %p76
      %p79 = scmp.ne.s32.totalorder %s62, %s78
      %p80 = scmp.eq.s32.totalorder %s28, 0
      %p81 = por %p79, %p80
      %s83 = sadd.s32 %s82, 1
      %p86 = scmp.eq.s32.totalorder %s22, 1
      %p87 = scmp.ne.s32.totalorder %s82, %s84
      %p88 = scmp.eq.s32.totalorder %s22, 0
      %p89 = por %p87, %p88
      %p90 = scmp.ne.s32.totalorder %s82, %s84
      %p91 = scmp.eq.s32.totalorder %s27, 1
      %p92 = por %p90, %p91
      %p93 = scmp.ne.s32.totalorder %s84, %s85
      %p94 = scmp.eq.s32.totalorder %s27, 0
      %p95 = por %p93, %p94
      %p96 = scmp.ne.s32.totalorder %s84, %s85
      %p97 = scmp.eq.s32.totalorder %s28, 1
      %p98 = por %p96, %p97
      %p100 = scmp.ne.s32.totalorder %s85, %s99
      %p101 = scmp.eq.s32.totalorder %s28, 0
      %p102 = por %p100, %p101
      %s104 = sadd.s32 %s103, 1
      %p107 = scmp.eq.s32.totalorder %s22, 1
      %p108 = scmp.ne.s32.totalorder %s103, %s105
      %p109 = scmp.eq.s32.totalorder %s22, 0
      %p110 = por %p108, %p109
      %p111 = scmp.ne.s32.totalorder %s103, %s105
      %p112 = scmp.eq.s32.totalorder %s27, 1
      %p113 = por %p111, %p112
      %p114 = scmp.ne.s32.totalorder %s105, %s106
      %p115 = scmp.eq.s32.totalorder %s27, 0
      %p116 = por %p114, %p115
      %p117 = scmp.ne.s32.totalorder %s105, %s106
      %p118 = scmp.eq.s32.totalorder %s28, 1
      %p119 = por %p117, %p118
      %p121 = scmp.ne.s32.totalorder %s106, %s120
      %p122 = scmp.eq.s32.totalorder %s28, 0
      %p123 = por %p121, %p122
      %s125 = sadd.s32 %s124, 1
      %p128 = scmp.eq.s32.totalorder %s22, 1
      %p129 = scmp.ne.s32.totalorder %s124, %s126
      %p130 = scmp.eq.s32.totalorder %s22, 0
      %p131 = por %p129, %p130
      %p132 = scmp.ne.s32.totalorder %s124, %s126
      %p133 = scmp.eq.s32.totalorder %s27, 1
      %p134 = por %p132, %p133
      %p135 = scmp.ne.s32.totalorder %s126, %s127
      %p136 = scmp.eq.s32.totalorder %s27, 0
      %p137 = por %p135, %p136
      %p138 = scmp.ne.s32.totalorder %s126, %s127
      %p139 = scmp.eq.s32.totalorder %s28, 1
      %p140 = por %p138, %p139
      %p142 = scmp.ne.s32.totalorder %s127, %s141
      %p143 = scmp.eq.s32.totalorder %s28, 0
      %p144 = por %p142, %p143
      %s146 = sadd.s32 %s145, 1
      %p149 = scmp.eq.s32.totalorder %s22, 1
      %p150 = scmp.ne.s32.totalorder %s145, %s147
      %p151 = scmp.eq.s32.totalorder %s22, 0
      %p152 = por %p150, %p151
      %p153 = scmp.ne.s32.totalorder %s145, %s147
      %p154 = scmp.eq.s32.totalorder %s27, 1
      %p155 = por %p153, %p154
      %p156 = scmp.ne.s32.totalorder %s147, %s148
      %p157 = scmp.eq.s32.totalorder %s27, 0
      %p158 = por %p156, %p157
      %p159 = scmp.ne.s32.totalorder %s147, %s148
      %p160 = scmp.eq.s32.totalorder %s28, 1
      %p161 = por %p159, %p160
      %p163 = scmp.ne.s32.totalorder %s148, %s162
      %p164 = scmp.eq.s32.totalorder %s28, 0
      %p165 = por %p163, %p164
      %s167 = sadd.s32 %s166, 1
      %p170 = scmp.eq.s32.totalorder %s22, 1
      %p171 = scmp.ne.s32.totalorder %s166, %s168
      %p172 = scmp.eq.s32.totalorder %s22, 0
      %p173 = por %p171, %p172
      %p174 = scmp.ne.s32.totalorder %s166, %s168
      %p175 = scmp.eq.s32.totalorder %s27, 1
      %p176 = por %p174, %p175
      %p177 = scmp.ne.s32.totalorder %s168, %s169
      %p178 = scmp.eq.s32.totalorder %s27, 0
      %p179 = por %p177, %p178
      %p180 = scmp.ne.s32.totalorder %s168, %s169
      %p181 = scmp.eq.s32.totalorder %s28, 1
      %p182 = por %p180, %p181
      %p184 = scmp.ne.s32.totalorder %s169, %s183
      %p185 = scmp.eq.s32.totalorder %s28, 0
      %p186 = por %p184, %p185
      %s188 = sadd.s32 %s187, 1
      %p191 = scmp.eq.s32.totalorder %s22, 1
      %p192 = scmp.ne.s32.totalorder %s187, %s189
      %p193 = scmp.eq.s32.totalorder %s22, 0
      %p194 = por %p192, %p193
      %p195 = scmp.ne.s32.totalorder %s187, %s189
      %p196 = scmp.eq.s32.totalorder %s27, 1
      %p197 = por %p195, %p196
      %p198 = scmp.ne.s32.totalorder %s189, %s190
      %p199 = scmp.eq.s32.totalorder %s27, 0
      %p200 = por %p198, %p199
      %p201 = scmp.ne.s32.totalorder %s189, %s190
      %p202 = scmp.eq.s32.totalorder %s28, 1
      %p203 = por %p201, %p202
      %p205 = scmp.ne.s32.totalorder %s190, %s204
      %p206 = scmp.eq.s32.totalorder %s28, 0
      %p207 = por %p205, %p206
      %s209 = sadd.s32 %s208, 1
      %p212 = scmp.eq.s32.totalorder %s22, 1
      %p213 = scmp.ne.s32.totalorder %s208, %s210
      %p214 = scmp.eq.s32.totalorder %s22, 0
      %p215 = por %p213, %p214
      %p216 = scmp.ne.s32.totalorder %s208, %s210
      %p217 = scmp.eq.s32.totalorder %s27, 1
      %p218 = por %p216, %p217
      %p219 = scmp.ne.s32.totalorder %s210, %s211
      %p220 = scmp.eq.s32.totalorder %s27, 0
      %p221 = por %p219, %p220
      %p222 = scmp.ne.s32.totalorder %s210, %s211
      %p223 = scmp.eq.s32.totalorder %s28, 1
      %p224 = por %p222, %p223
      %p226 = scmp.ne.s32.totalorder %s211, %s225
      %p227 = scmp.eq.s32.totalorder %s28, 0
      %p228 = por %p226, %p227
      %s230 = sadd.s32 %s229, 1
      %p233 = scmp.eq.s32.totalorder %s22, 1
      %p234 = scmp.ne.s32.totalorder %s229, %s231
      %p235 = scmp.eq.s32.totalorder %s22, 0
      %p236 = por %p234, %p235
      %p237 = scmp.ne.s32.totalorder %s229, %s231
      %p238 = scmp.eq.s32.totalorder %s27, 1
      %p239 = por %p237, %p238
      %p240 = scmp.ne.s32.totalorder %s231, %s232
      %p241 = scmp.eq.s32.totalorder %s27, 0
      %p242 = por %p240, %p241
      %p243 = scmp.ne.s32.totalorder %s231, %s232
      %p244 = scmp.eq.s32.totalorder %s28, 1
      %p245 = por %p243, %p244
      %p247 = scmp.ne.s32.totalorder %s232, %s246
      %p248 = scmp.eq.s32.totalorder %s28, 0
      %p249 = por %p247, %p248
      %s251 = sadd.s32 %s250, 1
      %p254 = scmp.eq.s32.totalorder %s22, 1
      %p255 = scmp.ne.s32.totalorder %s250, %s252
      %p256 = scmp.eq.s32.totalorder %s22, 0
      %p257 = por %p255, %p256
      %p258 = scmp.ne.s32.totalorder %s250, %s252
      %p259 = scmp.eq.s32.totalorder %s27, 1
      %p260 = por %p258, %p259
      %p261 = scmp.ne.s32.totalorder %s252, %s253
      %p262 = scmp.eq.s32.totalorder %s27, 0
      %p263 = por %p261, %p262
      %p264 = scmp.ne.s32.totalorder %s252, %s253
      %p265 = scmp.eq.s32.totalorder %s28, 1
      %p266 = por %p264, %p265
      %p268 = scmp.ne.s32.totalorder %s253, %s267
      %p269 = scmp.eq.s32.totalorder %s28, 0
      %p270 = por %p268, %p269
      %s271 = ssub.s32 %s22, %s29
      %p272 = scmp.eq.s32.totalorder %s271, 0
      %s274 = sadd.s32 %s273, 1
      %s275 = scalar_select %p272, %s273, %s274
      %p278 = pneg %p272
      %p279 = scmp.eq.s32.totalorder %s22, 1
      %p280 = por %p278, %p279
      %p281 = scmp.ne.s32.totalorder %s273, %s276
      %p282 = scmp.eq.s32.totalorder %s22, 0
      %p283 = por %p281, %p282
      %p284 = scmp.ne.s32.totalorder %s273, %s276
      %p285 = scmp.eq.s32.totalorder %s27, 1
      %p286 = por %p284, %p285
      %p287 = scmp.ne.s32.totalorder %s276, %s277
      %p288 = scmp.eq.s32.totalorder %s27, 0
      %p289 = por %p287, %p288
      %p290 = scmp.ne.s32.totalorder %s276, %s277
      %p291 = scmp.eq.s32.totalorder %s28, 1
      %p292 = por %p290, %p291
      %p294 = scmp.ne.s32.totalorder %s277, %s293
      %p295 = scmp.eq.s32.totalorder %s28, 0
      %p296 = por %p294, %p295
      %p297 = scmp.le.s32.totalorder 1, %s22
      %p298 = scmp.lt.s32.totalorder %s22, 3
      %p299 = pnand %p297, %p298
      %p300 = pneg %p299
      // Predicated region
      $region9: #{tpu_custom_call.1} parent=5 // pred_check
        _
      $region10: #{tpu_custom_call.1} parent=5 // pred_check_branch
        %302 = sbr.rel (%p299) target = $region12
      $region11: #{tpu_custom_call.1} parent=5 // pred_region
        %s303 = ssub.s32 %s22, 1
        // Predicated region
        $region13: #{tpu_custom_call.1} parent=11 // pred_check
          %p304 = pneg %p95
        $region14: #{tpu_custom_call.1} parent=11 // pred_check_branch
          %306 = sbr.rel (%p304) target = $region16
        $region15: #{tpu_custom_call.1} parent=11 // pred_region
          _
        $region16: #{tpu_custom_call.1} parent=11 // pred_fallthru
          _
        // Predicated region
        $region17: #{tpu_custom_call.1} parent=11 // pred_check
          %p307 = pneg %p116
        $region18: #{tpu_custom_call.1} parent=11 // pred_check_branch
          %309 = sbr.rel (%p307) target = $region20
        $region19: #{tpu_custom_call.1} parent=11 // pred_region
          _
        $region20: #{tpu_custom_call.1} parent=11 // pred_fallthru
          _
        // Predicated region
        $region21: #{tpu_custom_call.1} parent=11 // pred_check
          %p310 = pneg %p137
        $region22: #{tpu_custom_call.1} parent=11 // pred_check_branch
          %312 = sbr.rel (%p310) target = $region24
        $region23: #{tpu_custom_call.1} parent=11 // pred_region
          _
        $region24: #{tpu_custom_call.1} parent=11 // pred_fallthru
          _
        // Predicated region
        $region25: #{tpu_custom_call.1} parent=11 // pred_check
          %p313 = pneg %p158
        $region26: #{tpu_custom_call.1} parent=11 // pred_check_branch
          %315 = sbr.rel (%p313) target = $region28
        $region27: #{tpu_custom_call.1} parent=11 // pred_region
          %s317 = ssub.s32 32, 32
          %318 = vsyncadd [#allocation3], %s317
          %s320 = sshll.u32 [#allocation2], 4
          %s321 = int_to_ptr.vmem [resolvable:$true] %s320
          %323 = dma.hbm_to_vmem [thread:$0]  %s5, 32, %s321, [#allocation3]
        $region28: #{tpu_custom_call.1} parent=11 // pred_fallthru
          _
        // Predicated region
        $region29: #{tpu_custom_call.1} parent=11 // pred_check
          %p324 = pneg %p179
        $region30: #{tpu_custom_call.1} parent=11 // pred_check_branch
          %326 = sbr.rel (%p324) target = $region32
        $region31: #{tpu_custom_call.1} parent=11 // pred_region
          _
        $region32: #{tpu_custom_call.1} parent=11 // pred_fallthru
          _
        // Predicated region
        $region33: #{tpu_custom_call.1} parent=11 // pred_check
          %p327 = pneg %p200
        $region34: #{tpu_custom_call.1} parent=11 // pred_check_branch
          %329 = sbr.rel (%p327) target = $region36
        $region35: #{tpu_custom_call.1} parent=11 // pred_region
          _
        $region36: #{tpu_custom_call.1} parent=11 // pred_fallthru
          _
        // Predicated region
        $region37: #{tpu_custom_call.1} parent=11 // pred_check
          %p330 = pneg %p221
        $region38: #{tpu_custom_call.1} parent=11 // pred_check_branch
          %332 = sbr.rel (%p330) target = $region40
        $region39: #{tpu_custom_call.1} parent=11 // pred_region
          %s334 = ssub.s32 4096, 4096
          %335 = vsyncadd [#allocation6], %s334
          %s336 = sshll.u32 [#allocation5], 4
          %s337 = int_to_ptr.vmem [resolvable:$true] %s336
          %342 = dma.hbm_to_vmem [thread:$0]  %s8, 4096, %s337, [#allocation6], 128, 128, 8
        $region40: #{tpu_custom_call.1} parent=11 // pred_fallthru
          _
        // Predicated region
        $region41: #{tpu_custom_call.1} parent=11 // pred_check
          %p343 = pneg %p242
        $region42: #{tpu_custom_call.1} parent=11 // pred_check_branch
          %345 = sbr.rel (%p343) target = $region44
        $region43: #{tpu_custom_call.1} parent=11 // pred_region
          _
        $region44: #{tpu_custom_call.1} parent=11 // pred_fallthru
          _
        // Predicated region
        $region45: #{tpu_custom_call.1} parent=11 // pred_check
          %p346 = pneg %p263
        $region46: #{tpu_custom_call.1} parent=11 // pred_check_branch
          %348 = sbr.rel (%p346) target = $region48
        $region47: #{tpu_custom_call.1} parent=11 // pred_region
          _
        $region48: #{tpu_custom_call.1} parent=11 // pred_fallthru
          _
      $region12: #{tpu_custom_call.1} parent=5 // pred_fallthru
        _
      %p349 = scmp.lt.s32.totalorder %s22, 2
      // Predicated region
      $region49: #{tpu_custom_call.1} parent=5 // pred_check
        %p350 = pneg %p349
      $region50: #{tpu_custom_call.1} parent=5 // pred_check_branch
        %352 = sbr.rel (%p350) target = $region52
      $region51: #{tpu_custom_call.1} parent=5 // pred_region
        // Predicated region
        $region53: #{tpu_custom_call.1} parent=51 // pred_check
          %p353 = pneg %p42
        $region54: #{tpu_custom_call.1} parent=51 // pred_check_branch
          %355 = sbr.rel (%p353) target = $region56
        $region55: #{tpu_custom_call.1} parent=51 // pred_region
          %s356 = smul.u32 4, %s22
          %p357 = scmp.lt.s32.totalorder %s356, 7
          %s358 = scalar_select %p357, %s356, 7
          %s359 = smul.addr %s358, 8
          %s360 = scalar_lea.vmem %s0, %s359
          %s361 = smul.u32 4, %s22
        $region56: #{tpu_custom_call.1} parent=51 // pred_fallthru
          _
        // Predicated region
        $region57: #{tpu_custom_call.1} parent=51 // pred_check
          %p362 = pneg %p68
        $region58: #{tpu_custom_call.1} parent=51 // pred_check_branch
          %364 = sbr.rel (%p362) target = $region60
        $region59: #{tpu_custom_call.1} parent=51 // pred_region
          %s365 = smul.u32 4, %s22
          %p366 = scmp.lt.s32.totalorder %s365, 7
          %s367 = scalar_select %p366, %s365, 7
          %s368 = smul.addr %s367, 8
          %s369 = scalar_lea.vmem %s1, %s368
          %s370 = smul.u32 4, %s22
        $region60: #{tpu_custom_call.1} parent=51 // pred_fallthru
          _
      $region52: #{tpu_custom_call.1} parent=5 // pred_fallthru
        _
      %p371 = scmp.le.s32.totalorder 1, %s22
      %p372 = scmp.lt.s32.totalorder %s22, 3
      %p373 = pnand %p371, %p372
      %p374 = pneg %p373
      // Predicated region
      $region61: #{tpu_custom_call.1} parent=5 // pred_check
        _
      $region62: #{tpu_custom_call.1} parent=5 // pred_check_branch
        %376 = sbr.rel (%p373) target = $region64
      $region63: #{tpu_custom_call.1} parent=5 // pred_region
        %s377 = ssub.s32 %s22, 1
        // Predicated region
        $region65: #{tpu_custom_call.1} parent=63 // pred_check
          %p378 = pneg %p158
        $region66: #{tpu_custom_call.1} parent=63 // pred_check_branch
          %380 = sbr.rel (%p378) target = $region68
        $region67: #{tpu_custom_call.1} parent=63 // pred_region
          %381 = dma.done [#allocation3], 32
        $region68: #{tpu_custom_call.1} parent=63 // pred_fallthru
          _
        // Predicated region
        $region69: #{tpu_custom_call.1} parent=63 // pred_check
          %p382 = pneg %p221
        $region70: #{tpu_custom_call.1} parent=63 // pred_check_branch
          %384 = sbr.rel (%p382) target = $region72
        $region71: #{tpu_custom_call.1} parent=63 // pred_region
          %385 = dma.done [#allocation6], 4096
        $region72: #{tpu_custom_call.1} parent=63 // pred_fallthru
          _
        %s386 = smul.u32 4, %s27
        %p387 = scmp.lt.s32.totalorder %s386, 7
        %s388 = scalar_select %p387, %s386, 7
        %s389 = smul.addr %s388, 8
        %s390 = scalar_lea.vmem %s0, %s389
        %p391 = pneg %p48
        %p392 = pneg %p45
        %s393 = smul.u32 4, %s27
        %p394 = scmp.lt.s32.totalorder %s393, 7
        %s395 = scalar_select %p394, %s393, 7
        %s396 = smul.addr %s395, 8
        %s397 = scalar_lea.vmem %s1, %s396
        %p398 = pneg %p74
        %p399 = pneg %p71
        %p400 = pneg %p95
        %p401 = pneg %p92
        %p402 = pneg %p116
        %p403 = pneg %p113
        %p404 = pneg %p137
        %p405 = pneg %p134
        %p406 = pneg %p158
        %p407 = pneg %p155
        %p408 = pneg %p179
        %p409 = pneg %p176
        %p410 = pneg %p200
        %p411 = pneg %p197
        %p412 = pneg %p221
        %p413 = pneg %p218
        %p414 = pneg %p242
        %p415 = pneg %p239
        %p416 = pneg %p263
        %p417 = pneg %p260
        %p418 = pneg %p289
        %p419 = pneg %p286
        %s420 = sand.u32 %s276, 1
        %s421 = scalar_lea.sflag [#allocation4], %s420
        %s422 = sand.u32 %s276, 1
        %s423 = smul.addr %s422, 32
        %s424 = scalar_lea.vmem [#allocation7], %s423
        %s425 = smul.u32 4, %s27
        %p426 = scmp.lt.s32.totalorder %s425, 7
        %s427 = scalar_select %p426, %s425, 7
        %s428 = smul.addr %s427, 8
        %s429 = scalar_lea.vmem %s0, %s428
        %s430 = smul.u32 4, %s27
        %s431 = smul.u32 4, %s27
        %p432 = scmp.lt.s32.totalorder %s431, 7
        %s433 = scalar_select %p432, %s431, 7
        %s434 = smul.addr %s433, 8
        %s435 = scalar_lea.vmem %s1, %s434
        %s436 = smul.u32 4, %s27
        %s437 = smul.u32 4, %s27
        %v438 = vld [vmem:[%s429] sm:$0xff]
        %v439 = vld [vmem:[%s429 + $0x8] sm:$0xff]
        %v440 = vld [vmem:[%s429 + $0x10] sm:$0xff]
        %v441 = vld [vmem:[%s429 + $0x18] sm:$0xff]
        %v442 = vld [vmem:[%s2] sm:$0xff]
        %v443 = vld [vmem:[%s2 + $0x8] sm:$0xff]
        %v444 = vld [vmem:[%s2 + $0x10] sm:$0xff]
        %v445 = vld [vmem:[%s2 + $0x18] sm:$0xff]
        %v446 = vld [vmem:[%s2 + $0x20] sm:$0xff]
        %v447 = vld [vmem:[%s2 + $0x28] sm:$0xff]
        %v448 = vld [vmem:[%s2 + $0x30] sm:$0xff]
        %v449 = vld [vmem:[%s2 + $0x38] sm:$0xff]
        %v450 = vld [vmem:[%s2 + $0x40] sm:$0xff]
        %v451 = vld [vmem:[%s2 + $0x48] sm:$0xff]
        %v452 = vld [vmem:[%s2 + $0x50] sm:$0x1f]
        %v453 = vld [vmem:[%s2 + $0x58] sm:$0x1f]
        %v454 = vld [vmem:[%s3] sm:$0x3]
        %v456 = vlaneseq
        %v457 = vshrl.u32 %v456, 7
        %v458 = vsub.s32 0, %v457
        %v459 = vrot.slane %v454, %v458
        %v460 = vlaneseq
        %v461 = vshrl.u32 %v460, 7
        %v462 = vsub.s32 1, %v461
        %v463 = vrot.slane %v454, %v462
        %vm466 = vcmask 367616
        %v468 = vsel %vm466, %v438, 0
        %v471 = vsel %vm466, %v439, 0
        %v474 = vsel %vm466, %v440, 0
        %v477 = vsel %vm466, %v441, 0
        %vm479 = vcmask 1044480
        %v481 = vsel %vm479, %v452, 0
        %v484 = vsel %vm479, %v453, 0
        %486 = vmatprep.subr.mxu0 %v443
        %487 = vmatpush1.msra.mxu0 %v442
        %488 = vmatprep.subr.mxu0 %v445
        %489 = vmatpush1.msra.mxu0 %v444
        %490 = vmatprep.subr.mxu0 %v447
        %491 = vmatpush1.msra.mxu0 %v446
        %492 = vmatprep.subr.mxu0 %v449
        %493 = vmatpush1.msra.mxu0 %v448
        %494 = vmatprep.subr.mxu0 %v451
        %495 = vmatpush1.msra.mxu0 %v450
        %496 = vmatprep.subr.mxu0 %v484
        %497 = vmatpush1.msra.mxu0 %v481
        %498 = vmatprep.subr.mxu0 0.0
        %499 = vmatpush1.msra.mxu0 0.0
        %500 = vmatprep.subr.mxu0 0.0
        %501 = vmatpush1.msra.mxu0 0.0
        %502 = vmatprep.subr.mxu0 0.0
        %503 = vmatpush1.msra.mxu0 0.0
        %504 = vmatprep.subr.mxu0 0.0
        %505 = vmatpush1.msra.mxu0 0.0
        %506 = vmatprep.subr.mxu0 0.0
        %507 = vmatpush1.msra.mxu0 0.0
        %508 = vmatprep.subr.mxu0 0.0
        %509 = vmatpush1.msra.mxu0 0.0
        %510 = vmatprep.subr.mxu0 0.0
        %511 = vmatpush1.msra.mxu0 0.0
        %512 = vmatprep.subr.mxu0 0.0
        %513 = vmatpush1.msra.mxu0 0.0
        %514 = vmatprep.subr.mxu0 0.0
        %515 = vmatpush1.msra.mxu0 0.0
        %516 = vmatprep.subr.mxu0 0.0
        %517 = vmatpush1.msra.mxu0 0.0
        %518 = vmatprep.subr.mxu0 0.0
        %519 = vmatpush1.msra.mxu0 0.0
        %520 = vmatprep.subr.mxu0 0.0
        %521 = vmatpush1.msra.mxu0 0.0
        %522 = vmatprep.subr.mxu0 0.0
        %523 = vmatpush1.msra.mxu0 0.0
        %524 = vmatprep.subr.mxu0 0.0
        %525 = vmatpush1.msra.mxu0 0.0
        %526 = vmatprep.subr.mxu0 0.0
        %527 = vmatpush1.msra.mxu0 0.0
        %528 = vmatprep.subr.mxu0 0.0
        %529 = vmatpush1.msra.mxu0 0.0
        %530 = vmatprep.subr.mxu0 0.0
        %531 = vmatpush1.msra.mxu0 0.0
        %532 = vmatprep.subr.mxu0 0.0
        %533 = vmatpush1.msra.mxu0 0.0
        %534 = vmatprep.subr.mxu0 0.0
        %535 = vmatpush1.msra.mxu0 0.0
        %536 = vmatprep.subr.mxu0 0.0
        %537 = vmatpush1.msra.mxu0 0.0
        %538 = vmatprep.subr.mxu0 0.0
        %539 = vmatpush1.msra.mxu0 0.0
        %540 = vmatprep.subr.mxu0 0.0
        %541 = vmatpush1.msra.mxu0 0.0
        %542 = vmatprep.subr.mxu0 0.0
        %543 = vmatpush1.msra.mxu0 0.0
        %544 = vmatprep.subr.mxu0 0.0
        %545 = vmatpush1.msra.mxu0 0.0
        %546 = vmatprep.subr.mxu0 0.0
        %547 = vmatpush1.msra.mxu0 0.0
        %548 = vmatprep.subr.mxu0 0.0
        %549 = vmatpush1.msra.mxu0 0.0
        %550 = vmatprep.mubr.f32.mxu0 0.0
        %551 = vmatmul.mubr.f32.gmra.mrb[0].mxu0 %v468
        %v552 = vpop.f32.mrb[0].mxu0
        %v553 = vadd.f32 %v459, %v552
        %v554 = vpop.f32.mrb[0].mxu0
        %v555 = vadd.f32 %v463, %v554
        %556 = vmatprep.mubr.f32.mxu0 0.0
        %557 = vmatmul.mubr.f32.gmra.mrb[0].mxu0 %v471
        %v558 = vpop.f32.mrb[0].mxu0
        %v559 = vadd.f32 %v459, %v558
        %v560 = vpop.f32.mrb[0].mxu0
        %v561 = vadd.f32 %v463, %v560
        %562 = vmatprep.mubr.f32.mxu0 0.0
        %563 = vmatmul.mubr.f32.gmra.mrb[0].mxu0 %v474
        %v564 = vpop.f32.mrb[0].mxu0
        %v565 = vadd.f32 %v459, %v564
        %v566 = vpop.f32.mrb[0].mxu0
        %v567 = vadd.f32 %v463, %v566
        %568 = vmatprep.mubr.f32.mxu0 0.0
        %569 = vmatmul.mubr.f32.gmra.mrb[0].mxu0 %v477
        %v570 = vpop.f32.mrb[0].mxu0
        %v571 = vadd.f32 %v459, %v570
        %v572 = vpop.f32.mrb[0].mxu0
        %v573 = vadd.f32 %v463, %v572
        %574 = vdwg.mxu0
        %v575 = vadd.f32 %v553, %v555
        %576 = vadd.xlane.f32.xlu0 %v575
        %v577 = vpop.xlane.xlu0 %576
        %v578 = vadd.f32 %v559, %v561
        %579 = vadd.xlane.f32.xlu0 %v578
        %v580 = vpop.xlane.xlu0 %579
        %v581 = vadd.f32 %v565, %v567
        %582 = vadd.xlane.f32.xlu0 %v581
        %v583 = vpop.xlane.xlu0 %582
        %v584 = vadd.f32 %v571, %v573
        %585 = vadd.xlane.f32.xlu0 %v584
        %v586 = vpop.xlane.xlu0 %585
        %v587 = vmul.f32 %v577, 0.0055555557
        %v588 = vmul.f32 %v580, 0.0055555557
        %v589 = vmul.f32 %v583, 0.0055555557
        %v590 = vmul.f32 %v586, 0.0055555557
        %v591 = vsub.f32 %v553, %v587
        %v592 = vsub.f32 %v555, %v587
        %v593 = vsub.f32 %v559, %v588
        %v594 = vsub.f32 %v561, %v588
        %v595 = vsub.f32 %v565, %v589
        %v596 = vsub.f32 %v567, %v589
        %v597 = vsub.f32 %v571, %v590
        %v598 = vsub.f32 %v573, %v590
        %v599 = vmul.f32 %v591, %v591
        %v600 = vmul.f32 %v592, %v592
        %v601 = vmul.f32 %v593, %v593
        %v602 = vmul.f32 %v594, %v594
        %v603 = vmul.f32 %v595, %v595
        %v604 = vmul.f32 %v596, %v596
        %v605 = vmul.f32 %v597, %v597
        %v606 = vmul.f32 %v598, %v598
        %v607 = vadd.f32 %v599, %v600
        %608 = vadd.xlane.f32.xlu0 %v607
        %v609 = vpop.xlane.xlu0 %608
        %v610 = vadd.f32 %v601, %v602
        %611 = vadd.xlane.f32.xlu0 %v610
        %v612 = vpop.xlane.xlu0 %611
        %v613 = vadd.f32 %v603, %v604
        %614 = vadd.xlane.f32.xlu0 %v613
        %v615 = vpop.xlane.xlu0 %614
        %v616 = vadd.f32 %v605, %v606
        %617 = vadd.xlane.f32.xlu0 %v616
        %v618 = vpop.xlane.xlu0 %617
        %v619 = vmul.f32 %v587, %v587
        %v620 = vmul.f32 %v588, %v588
        %v621 = vmul.f32 %v589, %v589
        %v622 = vmul.f32 %v590, %v590
        %v623 = vmul.f32 %v619, 76.0
        %v624 = vmul.f32 %v620, 76.0
        %v625 = vmul.f32 %v621, 76.0
        %v626 = vmul.f32 %v622, 76.0
        %v627 = vsub.f32 %v609, %v623
        %v628 = vsub.f32 %v612, %v624
        %v629 = vsub.f32 %v615, %v625
        %v630 = vsub.f32 %v618, %v626
        %v631 = vmul.f32 %v627, 0.0055555557
        %v632 = vmul.f32 %v628, 0.0055555557
        %v633 = vmul.f32 %v629, 0.0055555557
        %v634 = vmul.f32 %v630, 0.0055555557
        %v635 = vmax.f32 %v631, 0.0
        %v636 = vmax.f32 %v632, 0.0
        %v637 = vmax.f32 %v633, 0.0
        %v638 = vmax.f32 %v634, 0.0
        %v639 = vadd.f32 %v635, 1e-05
        %v640 = vadd.f32 %v636, 1e-05
        %v641 = vadd.f32 %v637, 1e-05
        %v642 = vadd.f32 %v638, 1e-05
        %v643 = vrsqrt.pop %v639
        %v644 = vrsqrt.pop %v640
        %v645 = vrsqrt.pop %v641
        %v646 = vrsqrt.pop %v642
        %v647 = vmul.f32 %v591, %v643
        %v648 = vmul.f32 %v592, %v643
        %v649 = vmul.f32 %v593, %v644
        %v650 = vmul.f32 %v594, %v644
        %v651 = vmul.f32 %v595, %v645
        %v652 = vmul.f32 %v596, %v645
        %v653 = vmul.f32 %v597, %v646
        %v654 = vmul.f32 %v598, %v646
        %v655 = vld [vmem:[%s435] sm:$0xff]
        %v656 = vld [vmem:[%s435 + $0x8] sm:$0xff]
        %v657 = vld [vmem:[%s435 + $0x10] sm:$0xff]
        %v658 = vld [vmem:[%s435 + $0x18] sm:$0xff]
        %v659 = vld [vmem:[%s4] sm:$0xff]
        %v660 = vld [vmem:[%s4 + $0x8] sm:$0xff]
        %v661 = vld [vmem:[%s4 + $0x10] sm:$0x3]
        %v662 = vld [vmem:[%s4 + $0x18] sm:$0x3]
        %v663 = vld [vmem:[#allocation2] sm:$0x3]
        %v665 = vlaneseq
        %v666 = vshrl.u32 %v665, 7
        %v667 = vsub.s32 0, %v666
        %v668 = vrot.slane %v663, %v667
        %v669 = vlaneseq
        %v670 = vshrl.u32 %v669, 7
        %v671 = vsub.s32 1, %v670
        %v672 = vrot.slane %v663, %v671
        %vm675 = vcmask 80896
        %v677 = vsel %vm675, %v655, 0
        %v680 = vsel %vm675, %v656, 0
        %v683 = vsel %vm675, %v657, 0
        %v686 = vsel %vm675, %v658, 0
        %vm688 = vcmask 1041408
        %v690 = vsel %vm688, %v661, 0
        %v693 = vsel %vm688, %v662, 0
        %695 = vmatprep.subr.mxu0 %v660
        %696 = vmatpush1.msra.mxu0 %v659
        %697 = vmatprep.subr.mxu0 %v693
        %698 = vmatpush1.msra.mxu0 %v690
        %699 = vmatprep.subr.mxu0 0.0
        %700 = vmatpush1.msra.mxu0 0.0
        %701 = vmatprep.subr.mxu0 0.0
        %702 = vmatpush1.msra.mxu0 0.0
        %703 = vmatprep.subr.mxu0 0.0
        %704 = vmatpush1.msra.mxu0 0.0
        %705 = vmatprep.subr.mxu0 0.0
        %706 = vmatpush1.msra.mxu0 0.0
        %707 = vmatprep.subr.mxu0 0.0
        %708 = vmatpush1.msra.mxu0 0.0
        %709 = vmatprep.subr.mxu0 0.0
        %710 = vmatpush1.msra.mxu0 0.0
        %711 = vmatprep.subr.mxu0 0.0
        %712 = vmatpush1.msra.mxu0 0.0
        %713 = vmatprep.subr.mxu0 0.0
        %714 = vmatpush1.msra.mxu0 0.0
        %715 = vmatprep.subr.mxu0 0.0
        %716 = vmatpush1.msra.mxu0 0.0
        %717 = vmatprep.subr.mxu0 0.0
        %718 = vmatpush1.msra.mxu0 0.0
        %719 = vmatprep.subr.mxu0 0.0
        %720 = vmatpush1.msra.mxu0 0.0
        %721 = vmatprep.subr.mxu0 0.0
        %722 = vmatpush1.msra.mxu0 0.0
        %723 = vmatprep.subr.mxu0 0.0
        %724 = vmatpush1.msra.mxu0 0.0
        %725 = vmatprep.subr.mxu0 0.0
        %726 = vmatpush1.msra.mxu0 0.0
        %727 = vmatprep.subr.mxu0 0.0
        %728 = vmatpush1.msra.mxu0 0.0
        %729 = vmatprep.subr.mxu0 0.0
        %730 = vmatpush1.msra.mxu0 0.0
        %731 = vmatprep.subr.mxu0 0.0
        %732 = vmatpush1.msra.mxu0 0.0
        %733 = vmatprep.subr.mxu0 0.0
        %734 = vmatpush1.msra.mxu0 0.0
        %735 = vmatprep.subr.mxu0 0.0
        %736 = vmatpush1.msra.mxu0 0.0
        %737 = vmatprep.subr.mxu0 0.0
        %738 = vmatpush1.msra.mxu0 0.0
        %739 = vmatprep.subr.mxu0 0.0
        %740 = vmatpush1.msra.mxu0 0.0
        %741 = vmatprep.subr.mxu0 0.0
        %742 = vmatpush1.msra.mxu0 0.0
        %743 = vmatprep.subr.mxu0 0.0
        %744 = vmatpush1.msra.mxu0 0.0
        %745 = vmatprep.subr.mxu0 0.0
        %746 = vmatpush1.msra.mxu0 0.0
        %747 = vmatprep.subr.mxu0 0.0
        %748 = vmatpush1.msra.mxu0 0.0
        %749 = vmatprep.subr.mxu0 0.0
        %750 = vmatpush1.msra.mxu0 0.0
        %751 = vmatprep.subr.mxu0 0.0
        %752 = vmatpush1.msra.mxu0 0.0
        %753 = vmatprep.subr.mxu0 0.0
        %754 = vmatpush1.msra.mxu0 0.0
        %755 = vmatprep.subr.mxu0 0.0
        %756 = vmatpush1.msra.mxu0 0.0
        %757 = vmatprep.subr.mxu0 0.0
        %758 = vmatpush1.msra.mxu0 0.0
        %759 = vmatprep.mubr.f32.mxu0 0.0
        %760 = vmatmul.mubr.f32.gmra.mrb[0].mxu0 %v677
        %v761 = vpop.f32.mrb[0].mxu0
        %v762 = vadd.f32 %v668, %v761
        %v763 = vpop.f32.mrb[0].mxu0
        %v764 = vadd.f32 %v672, %v763
        %765 = vmatprep.mubr.f32.mxu0 0.0
        %766 = vmatmul.mubr.f32.gmra.mrb[0].mxu0 %v680
        %v767 = vpop.f32.mrb[0].mxu0
        %v768 = vadd.f32 %v668, %v767
        %v769 = vpop.f32.mrb[0].mxu0
        %v770 = vadd.f32 %v672, %v769
        %771 = vmatprep.mubr.f32.mxu0 0.0
        %772 = vmatmul.mubr.f32.gmra.mrb[0].mxu0 %v683
        %v773 = vpop.f32.mrb[0].mxu0
        %v774 = vadd.f32 %v668, %v773
        %v775 = vpop.f32.mrb[0].mxu0
        %v776 = vadd.f32 %v672, %v775
        %777 = vmatprep.mubr.f32.mxu0 0.0
        %778 = vmatmul.mubr.f32.gmra.mrb[0].mxu0 %v686
        %v779 = vpop.f32.mrb[0].mxu0
        %v780 = vadd.f32 %v668, %v779
        %v781 = vpop.f32.mrb[0].mxu0
        %v782 = vadd.f32 %v672, %v781
        %783 = vdwg.mxu0
        %v784 = vld [vmem:[%s6] sm:$0xff]
        %v785 = vld [vmem:[%s6 + $0x8] sm:$0xff]
        %v786 = vld [vmem:[%s6 + $0x10] sm:$0x3]
        %v787 = vld [vmem:[%s6 + $0x18] sm:$0x3]
        %v788 = vld [vmem:[%s7] sm:$0x3]
        %v790 = vlaneseq
        %v791 = vshrl.u32 %v790, 7
        %v792 = vsub.s32 0, %v791
        %v793 = vrot.slane %v788, %v792
        %v794 = vlaneseq
        %v795 = vshrl.u32 %v794, 7
        %v796 = vsub.s32 1, %v795
        %v797 = vrot.slane %v788, %v796
        %v801 = vsel %vm688, %v786, 0
        %v804 = vsel %vm688, %v787, 0
        %806 = vmatprep.subr.mxu0 %v785
        %807 = vmatpush1.msra.mxu0 %v784
        %808 = vmatprep.subr.mxu0 %v804
        %809 = vmatpush1.msra.mxu0 %v801
        %810 = vmatprep.subr.mxu0 0.0
        %811 = vmatpush1.msra.mxu0 0.0
        %812 = vmatprep.subr.mxu0 0.0
        %813 = vmatpush1.msra.mxu0 0.0
        %814 = vmatprep.subr.mxu0 0.0
        %815 = vmatpush1.msra.mxu0 0.0
        %816 = vmatprep.subr.mxu0 0.0
        %817 = vmatpush1.msra.mxu0 0.0
        %818 = vmatprep.subr.mxu0 0.0
        %819 = vmatpush1.msra.mxu0 0.0
        %820 = vmatprep.subr.mxu0 0.0
        %821 = vmatpush1.msra.mxu0 0.0
        %822 = vmatprep.subr.mxu0 0.0
        %823 = vmatpush1.msra.mxu0 0.0
        %824 = vmatprep.subr.mxu0 0.0
        %825 = vmatpush1.msra.mxu0 0.0
        %826 = vmatprep.subr.mxu0 0.0
        %827 = vmatpush1.msra.mxu0 0.0
        %828 = vmatprep.subr.mxu0 0.0
        %829 = vmatpush1.msra.mxu0 0.0
        %830 = vmatprep.subr.mxu0 0.0
        %831 = vmatpush1.msra.mxu0 0.0
        %832 = vmatprep.subr.mxu0 0.0
        %833 = vmatpush1.msra.mxu0 0.0
        %834 = vmatprep.subr.mxu0 0.0
        %835 = vmatpush1.msra.mxu0 0.0
        %836 = vmatprep.subr.mxu0 0.0
        %837 = vmatpush1.msra.mxu0 0.0
        %838 = vmatprep.subr.mxu0 0.0
        %839 = vmatpush1.msra.mxu0 0.0
        %840 = vmatprep.subr.mxu0 0.0
        %841 = vmatpush1.msra.mxu0 0.0
        %842 = vmatprep.subr.mxu0 0.0
        %843 = vmatpush1.msra.mxu0 0.0
        %844 = vmatprep.subr.mxu0 0.0
        %845 = vmatpush1.msra.mxu0 0.0
        %846 = vmatprep.subr.mxu0 0.0
        %847 = vmatpush1.msra.mxu0 0.0
        %848 = vmatprep.subr.mxu0 0.0
        %849 = vmatpush1.msra.mxu0 0.0
        %850 = vmatprep.subr.mxu0 0.0
        %851 = vmatpush1.msra.mxu0 0.0
        %852 = vmatprep.subr.mxu0 0.0
        %853 = vmatpush1.msra.mxu0 0.0
        %854 = vmatprep.subr.mxu0 0.0
        %855 = vmatpush1.msra.mxu0 0.0
        %856 = vmatprep.subr.mxu0 0.0
        %857 = vmatpush1.msra.mxu0 0.0
        %858 = vmatprep.subr.mxu0 0.0
        %859 = vmatpush1.msra.mxu0 0.0
        %860 = vmatprep.subr.mxu0 0.0
        %861 = vmatpush1.msra.mxu0 0.0
        %862 = vmatprep.subr.mxu0 0.0
        %863 = vmatpush1.msra.mxu0 0.0
        %864 = vmatprep.subr.mxu0 0.0
        %865 = vmatpush1.msra.mxu0 0.0
        %866 = vmatprep.subr.mxu0 0.0
        %867 = vmatpush1.msra.mxu0 0.0
        %868 = vmatprep.subr.mxu0 0.0
        %869 = vmatpush1.msra.mxu0 0.0
        %870 = vmatprep.mubr.f32.mxu0 0.0
        %871 = vmatmul.mubr.f32.gmra.mrb[0].mxu0 %v677
        %v872 = vpop.f32.mrb[0].mxu0
        %v873 = vadd.f32 %v793, %v872
        %v874 = vpop.f32.mrb[0].mxu0
        %v875 = vadd.f32 %v797, %v874
        %876 = vmatprep.mubr.f32.mxu0 0.0
        %877 = vmatmul.mubr.f32.gmra.mrb[0].mxu0 %v680
        %v878 = vpop.f32.mrb[0].mxu0
        %v879 = vadd.f32 %v793, %v878
        %v880 = vpop.f32.mrb[0].mxu0
        %v881 = vadd.f32 %v797, %v880
        %882 = vmatprep.mubr.f32.mxu0 0.0
        %883 = vmatmul.mubr.f32.gmra.mrb[0].mxu0 %v683
        %v884 = vpop.f32.mrb[0].mxu0
        %v885 = vadd.f32 %v793, %v884
        %v886 = vpop.f32.mrb[0].mxu0
        %v887 = vadd.f32 %v797, %v886
        %888 = vmatprep.mubr.f32.mxu0 0.0
        %889 = vmatmul.mubr.f32.gmra.mrb[0].mxu0 %v686
        %v890 = vpop.f32.mrb[0].mxu0
        %v891 = vadd.f32 %v793, %v890
        %v892 = vpop.f32.mrb[0].mxu0
        %v893 = vadd.f32 %v797, %v892
        %894 = vdwg.mxu0
        %v895 = vmul.f32 %v762, %v647
        %v896 = vmul.f32 %v764, %v648
        %v897 = vmul.f32 %v768, %v649
        %v898 = vmul.f32 %v770, %v650
        %v899 = vmul.f32 %v774, %v651
        %v900 = vmul.f32 %v776, %v652
        %v901 = vmul.f32 %v780, %v653
        %v902 = vmul.f32 %v782, %v654
        %v903 = vadd.f32 %v895, %v873
        %v904 = vadd.f32 %v896, %v875
        %v905 = vadd.f32 %v897, %v879
        %v906 = vadd.f32 %v898, %v881
        %v907 = vadd.f32 %v899, %v885
        %v908 = vadd.f32 %v900, %v887
        %v909 = vadd.f32 %v901, %v891
        %v910 = vadd.f32 %v902, %v893
        %v911 = vmax.f32 %v903, 0.0
        %v912 = vmax.f32 %v904, 0.0
        %v913 = vmax.f32 %v905, 0.0
        %v914 = vmax.f32 %v906, 0.0
        %v915 = vmax.f32 %v907, 0.0
        %v916 = vmax.f32 %v908, 0.0
        %v917 = vmax.f32 %v909, 0.0
        %v918 = vmax.f32 %v910, 0.0
        %v919 = vld [vmem:[#allocation5] sm:$0xff]
        %v920 = vld [vmem:[#allocation5 + $0x8] sm:$0xff]
        %v921 = vld [vmem:[#allocation5 + $0x10] sm:$0xff]
        %v922 = vld [vmem:[#allocation5 + $0x18] sm:$0xff]
        %v923 = vld [vmem:[#allocation5 + $0x20] sm:$0xff]
        %v924 = vld [vmem:[#allocation5 + $0x28] sm:$0xff]
        %v925 = vld [vmem:[#allocation5 + $0x30] sm:$0xff]
        %v926 = vld [vmem:[#allocation5 + $0x38] sm:$0xff]
        %v927 = vld [vmem:[#allocation5 + $0x40] sm:$0xff]
        %v928 = vld [vmem:[#allocation5 + $0x48] sm:$0xff]
        %v929 = vld [vmem:[#allocation5 + $0x50] sm:$0xff]
        %v930 = vld [vmem:[#allocation5 + $0x58] sm:$0xff]
        %v931 = vld [vmem:[#allocation5 + $0x60] sm:$0xff]
        %v932 = vld [vmem:[#allocation5 + $0x68] sm:$0xff]
        %v933 = vld [vmem:[#allocation5 + $0x70] sm:$0xff]
        %v934 = vld [vmem:[#allocation5 + $0x78] sm:$0xff]
        %v935 = vld [vmem:[#allocation5 + $0x80] sm:$0xff]
        %v936 = vld [vmem:[#allocation5 + $0x88] sm:$0xff]
        %v937 = vld [vmem:[#allocation5 + $0x90] sm:$0xff]
        %v938 = vld [vmem:[#allocation5 + $0x98] sm:$0xff]
        %v939 = vld [vmem:[#allocation5 + $0xa0] sm:$0xff]
        %v940 = vld [vmem:[#allocation5 + $0xa8] sm:$0xff]
        %v941 = vld [vmem:[#allocation5 + $0xb0] sm:$0xff]
        %v942 = vld [vmem:[#allocation5 + $0xb8] sm:$0xff]
        %v943 = vld [vmem:[#allocation5 + $0xc0] sm:$0xff]
        %v944 = vld [vmem:[#allocation5 + $0xc8] sm:$0xff]
        %v945 = vld [vmem:[#allocation5 + $0xd0] sm:$0xff]
        %v946 = vld [vmem:[#allocation5 + $0xd8] sm:$0xff]
        %v947 = vld [vmem:[#allocation5 + $0xe0] sm:$0xff]
        %v948 = vld [vmem:[#allocation5 + $0xe8] sm:$0xff]
        %v949 = vld [vmem:[#allocation5 + $0xf0] sm:$0xff]
        %v950 = vld [vmem:[#allocation5 + $0xf8] sm:$0xff]
        %v951 = vld [vmem:[%s9] sm:$0xff]
        %v952 = vld [vmem:[%s9 + $0x8] sm:$0xff]
        %v953 = vld [vmem:[%s9 + $0x10] sm:$0xff]
        %v954 = vld [vmem:[%s9 + $0x18] sm:$0xff]
        %v955 = vld [vmem:[%s9 + $0x20] sm:$0xff]
        %v956 = vld [vmem:[%s9 + $0x28] sm:$0x1f]
        %v958 = vsel %vm479, %v956, 0
        %960 = vmatprep.subr.mxu0 0.0
        %961 = vmatpush1.msra.mxu0 %v951
        %962 = vmatprep.subr.mxu0 0.0
        %963 = vmatpush1.msra.mxu0 %v952
        %964 = vmatprep.subr.mxu0 0.0
        %965 = vmatpush1.msra.mxu0 %v953
        %966 = vmatprep.subr.mxu0 0.0
        %967 = vmatpush1.msra.mxu0 %v954
        %968 = vmatprep.subr.mxu0 0.0
        %969 = vmatpush1.msra.mxu0 %v955
        %970 = vmatprep.subr.mxu0 0.0
        %971 = vmatpush1.msra.mxu0 %v958
        %972 = vmatprep.subr.mxu0 0.0
        %973 = vmatpush1.msra.mxu0 0.0
        %974 = vmatprep.subr.mxu0 0.0
        %975 = vmatpush1.msra.mxu0 0.0
        %976 = vmatprep.subr.mxu0 0.0
        %977 = vmatpush1.msra.mxu0 0.0
        %978 = vmatprep.subr.mxu0 0.0
        %979 = vmatpush1.msra.mxu0 0.0
        %980 = vmatprep.subr.mxu0 0.0
        %981 = vmatpush1.msra.mxu0 0.0
        %982 = vmatprep.subr.mxu0 0.0
        %983 = vmatpush1.msra.mxu0 0.0
        %984 = vmatprep.subr.mxu0 0.0
        %985 = vmatpush1.msra.mxu0 0.0
        %986 = vmatprep.subr.mxu0 0.0
        %987 = vmatpush1.msra.mxu0 0.0
        %988 = vmatprep.subr.mxu0 0.0
        %989 = vmatpush1.msra.mxu0 0.0
        %990 = vmatprep.subr.mxu0 0.0
        %991 = vmatpush1.msra.mxu0 0.0
        %992 = vmatprep.subr.mxu0 0.0
        %993 = vmatpush1.msra.mxu0 0.0
        %994 = vmatprep.subr.mxu0 0.0
        %995 = vmatpush1.msra.mxu0 0.0
        %996 = vmatprep.subr.mxu0 0.0
        %997 = vmatpush1.msra.mxu0 0.0
        %998 = vmatprep.subr.mxu0 0.0
        %999 = vmatpush1.msra.mxu0 0.0
        %1000 = vmatprep.subr.mxu0 0.0
        %1001 = vmatpush1.msra.mxu0 0.0
        %1002 = vmatprep.subr.mxu0 0.0
        %1003 = vmatpush1.msra.mxu0 0.0
        %1004 = vmatprep.subr.mxu0 0.0
        %1005 = vmatpush1.msra.mxu0 0.0
        %1006 = vmatprep.subr.mxu0 0.0
        %1007 = vmatpush1.msra.mxu0 0.0
        %1008 = vmatprep.subr.mxu0 0.0
        %1009 = vmatpush1.msra.mxu0 0.0
        %1010 = vmatprep.subr.mxu0 0.0
        %1011 = vmatpush1.msra.mxu0 0.0
        %1012 = vmatprep.subr.mxu0 0.0
        %1013 = vmatpush1.msra.mxu0 0.0
        %1014 = vmatprep.subr.mxu0 0.0
        %1015 = vmatpush1.msra.mxu0 0.0
        %1016 = vmatprep.subr.mxu0 0.0
        %1017 = vmatpush1.msra.mxu0 0.0
        %1018 = vmatprep.subr.mxu0 0.0
        %1019 = vmatpush1.msra.mxu0 0.0
        %1020 = vmatprep.subr.mxu0 0.0
        %1021 = vmatpush1.msra.mxu0 0.0
        %1022 = vmatprep.subr.mxu0 0.0
        %1023 = vmatpush1.msra.mxu0 0.0
        %1024 = vmatprep.mubr.f32.mxu0 0.0
        %1025 = vmatmul.mubr.f32.gmra.mrb[0].mxu0 %v468
        %v1026 = vpop.f32.mrb[0].mxu0
        %v1027 = vadd.f32 0.0, %v1026
        %v1028 = vpop.f32.mrb[0].mxu0
        %1029 = vmatprep.mubr.f32.mxu0 0.0
        %1030 = vmatmul.mubr.f32.gmra.mrb[0].mxu0 %v471
        %v1031 = vpop.f32.mrb[0].mxu0
        %v1032 = vadd.f32 0.0, %v1031
        %v1033 = vpop.f32.mrb[0].mxu0
        %1034 = vmatprep.mubr.f32.mxu0 0.0
        %1035 = vmatmul.mubr.f32.gmra.mrb[0].mxu0 %v474
        %v1036 = vpop.f32.mrb[0].mxu0
        %v1037 = vadd.f32 0.0, %v1036
        %v1038 = vpop.f32.mrb[0].mxu0
        %1039 = vmatprep.mubr.f32.mxu0 0.0
        %1040 = vmatmul.mubr.f32.gmra.mrb[0].mxu0 %v477
        %v1041 = vpop.f32.mrb[0].mxu0
        %v1042 = vadd.f32 0.0, %v1041
        %v1043 = vpop.f32.mrb[0].mxu0
        %1044 = vdwg.mxu0
        %1045 = vmatprep.subr.mxu0 0.0
        %1046 = vmatpush1.msra.mxu0 %v919
        %1047 = vmatprep.subr.mxu0 0.0
        %1048 = vmatpush1.msra.mxu0 %v920
        %1049 = vmatprep.subr.mxu0 0.0
        %1050 = vmatpush1.msra.mxu0 %v921
        %1051 = vmatprep.subr.mxu0 0.0
        %1052 = vmatpush1.msra.mxu0 %v922
        %1053 = vmatprep.subr.mxu0 0.0
        %1054 = vmatpush1.msra.mxu0 %v923
        %1055 = vmatprep.subr.mxu0 0.0
        %1056 = vmatpush1.msra.mxu0 %v924
        %1057 = vmatprep.subr.mxu0 0.0
        %1058 = vmatpush1.msra.mxu0 %v925
        %1059 = vmatprep.subr.mxu0 0.0
        %1060 = vmatpush1.msra.mxu0 %v926
        %1061 = vmatprep.subr.mxu0 0.0
        %1062 = vmatpush1.msra.mxu0 %v927
        %1063 = vmatprep.subr.mxu0 0.0
        %1064 = vmatpush1.msra.mxu0 %v928
        %1065 = vmatprep.subr.mxu0 0.0
        %1066 = vmatpush1.msra.mxu0 %v929
        %1067 = vmatprep.subr.mxu0 0.0
        %1068 = vmatpush1.msra.mxu0 %v930
        %1069 = vmatprep.subr.mxu0 0.0
        %1070 = vmatpush1.msra.mxu0 %v931
        %1071 = vmatprep.subr.mxu0 0.0
        %1072 = vmatpush1.msra.mxu0 %v932
        %1073 = vmatprep.subr.mxu0 0.0
        %1074 = vmatpush1.msra.mxu0 %v933
        %1075 = vmatprep.subr.mxu0 0.0
        %1076 = vmatpush1.msra.mxu0 %v934
        %1077 = vmatprep.subr.mxu0 0.0
        %1078 = vmatpush1.msra.mxu0 %v935
        %1079 = vmatprep.subr.mxu0 0.0
        %1080 = vmatpush1.msra.mxu0 %v936
        %1081 = vmatprep.subr.mxu0 0.0
        %1082 = vmatpush1.msra.mxu0 %v937
        %1083 = vmatprep.subr.mxu0 0.0
        %1084 = vmatpush1.msra.mxu0 %v938
        %1085 = vmatprep.subr.mxu0 0.0
        %1086 = vmatpush1.msra.mxu0 %v939
        %1087 = vmatprep.subr.mxu0 0.0
        %1088 = vmatpush1.msra.mxu0 %v940
        %1089 = vmatprep.subr.mxu0 0.0
        %1090 = vmatpush1.msra.mxu0 %v941
        %1091 = vmatprep.subr.mxu0 0.0
        %1092 = vmatpush1.msra.mxu0 %v942
        %1093 = vmatprep.subr.mxu0 0.0
        %1094 = vmatpush1.msra.mxu0 %v943
        %1095 = vmatprep.subr.mxu0 0.0
        %1096 = vmatpush1.msra.mxu0 %v944
        %1097 = vmatprep.subr.mxu0 0.0
        %1098 = vmatpush1.msra.mxu0 %v945
        %1099 = vmatprep.subr.mxu0 0.0
        %1100 = vmatpush1.msra.mxu0 %v946
        %1101 = vmatprep.subr.mxu0 0.0
        %1102 = vmatpush1.msra.mxu0 %v947
        %1103 = vmatprep.subr.mxu0 0.0
        %1104 = vmatpush1.msra.mxu0 %v948
        %1105 = vmatprep.subr.mxu0 0.0
        %1106 = vmatpush1.msra.mxu0 %v949
        %1107 = vmatprep.subr.mxu0 0.0
        %1108 = vmatpush1.msra.mxu0 %v950
        %1109 = vmatprep.mubr.f32.mxu0 %v912
        %1110 = vmatmul.mubr.f32.gmra.mrb[0].mxu0 %v911
        %v1111 = vpop.f32.mrb[0].mxu0
        %v1112 = vadd.f32 %v1027, %v1111
        %v1113 = vpop.f32.mrb[0].mxu0
        %1114 = vmatprep.mubr.f32.mxu0 %v914
        %1115 = vmatmul.mubr.f32.gmra.mrb[0].mxu0 %v913
        %v1116 = vpop.f32.mrb[0].mxu0
        %v1117 = vadd.f32 %v1032, %v1116
        %v1118 = vpop.f32.mrb[0].mxu0
        %1119 = vmatprep.mubr.f32.mxu0 %v916
        %1120 = vmatmul.mubr.f32.gmra.mrb[0].mxu0 %v915
        %v1121 = vpop.f32.mrb[0].mxu0
        %v1122 = vadd.f32 %v1037, %v1121
        %v1123 = vpop.f32.mrb[0].mxu0
        %1124 = vmatprep.mubr.f32.mxu0 %v918
        %1125 = vmatmul.mubr.f32.gmra.mrb[0].mxu0 %v917
        %v1126 = vpop.f32.mrb[0].mxu0
        %v1127 = vadd.f32 %v1042, %v1126
        %v1128 = vpop.f32.mrb[0].mxu0
        %1129 = vdwg.mxu0
        %v1130 = vld [vmem:[%s10] sm:$0x1]
        %v1132 = vlaneseq
        %v1133 = vshrl.u32 %v1132, 7
        %v1134 = vsub.s32 0, %v1133
        %v1135 = vrot.slane %v1130, %v1134
        %v1137 = vadd.f32 %v1112, %v1135
        %v1138 = vadd.f32 %v1117, %v1135
        %v1139 = vadd.f32 %v1122, %v1135
        %v1140 = vadd.f32 %v1127, %v1135
        %1141 = vst [vmem:[%s424] sm:$0xff] %v1137
        %1142 = vst [vmem:[%s424 + $0x8] sm:$0xff] %v1138
        %1143 = vst [vmem:[%s424 + $0x10] sm:$0xff] %v1139
        %1144 = vst [vmem:[%s424 + $0x18] sm:$0xff] %v1140
        %s1145 = sand.u32 %s276, 1
        %s1146 = scalar_lea.sflag [#allocation4], %s1145
        %s1147 = sand.u32 %s276, 1
        %s1148 = smul.addr %s1147, 32
        %s1149 = scalar_lea.vmem [#allocation7], %s1148
        // Predicated region
        $region73: #{tpu_custom_call.1} parent=63 // pred_check
          %p1150 = pneg %p286
        $region74: #{tpu_custom_call.1} parent=63 // pred_check_branch
          %1152 = sbr.rel (%p1150) target = $region76
        $region75: #{tpu_custom_call.1} parent=63 // pred_region
          %s1153 = smul.u32 4, %s27
          %s1155 = ssub.s32 512, 512
          %1156 = vsyncadd %s1146, %s1155
          %s1157 = smul.addr %s1153, 128
          %s1158 = scalar_lea.hbm %s11, %s1157
          %s1159 = sshll.u32 %s1149, 4
          %s1160 = int_to_ptr.vmem [resolvable:$true] %s1159
          %1165 = dma.vmem_to_hbm [thread:$0]  %s1160, 512, %s1158, %s1146, 128, 128, 8
        $region76: #{tpu_custom_call.1} parent=63 // pred_fallthru
          _
      $region64: #{tpu_custom_call.1} parent=5 // pred_fallthru
        _
      %p1166 = scmp.le.s32.totalorder 2, %s22
      // Predicated region
      $region77: #{tpu_custom_call.1} parent=5 // pred_check
        %p1167 = pneg %p1166
      $region78: #{tpu_custom_call.1} parent=5 // pred_check_branch
        %1169 = sbr.rel (%p1167) target = $region80
      $region79: #{tpu_custom_call.1} parent=5 // pred_region
        %s1170 = ssub.s32 %s22, 2
        // Predicated region
        $region81: #{tpu_custom_call.1} parent=79 // pred_check
          %p1171 = pneg %p292
        $region82: #{tpu_custom_call.1} parent=79 // pred_check_branch
          %1173 = sbr.rel (%p1171) target = $region84
        $region83: #{tpu_custom_call.1} parent=79 // pred_region
          %s1174 = sand.u32 %s277, 1
          %s1175 = scalar_lea.sflag [#allocation4], %s1174
          %s1176 = sand.u32 %s277, 1
          %s1177 = smul.addr %s1176, 32
          %s1178 = scalar_lea.vmem [#allocation7], %s1177
          %1179 = dma.done %s1175, 512
        $region84: #{tpu_custom_call.1} parent=79 // pred_fallthru
          _
      $region80: #{tpu_custom_call.1} parent=5 // pred_fallthru
        _
    $region6: #{tpu_custom_call.1} parent=1 // loop_footer
      %s26 = sadd.s32 1, %s22
    $region7: #{tpu_custom_call.1} parent=1 // loop_footer_branch
      %21 = sbr.rel target = $region3
    $region8: #{tpu_custom_call.1} parent=1 // loop_exit
      _
    %1180 = vsyncpa [#allocation3], 1
    %s1181 = scalar_lea.sflag [#allocation3], 1
    %1182 = vsyncpa %s1181, 1
    %1183 = vsyncpa [#allocation6], 1
    %1184 = vsyncpa [#allocation4], 1
    %s1185 = scalar_lea.sflag [#allocation4], 1
    %1186 = vsyncpa %s1185, 1

</llo_original>
